<compile_context>
chip_gen: v6e
topology: v6e:2x2x1
jax: 0.10.0
libtpu: 0.0.40
codegen_flags: <defaults>
</compile_context>

<pallas_src>
import math
from functools import partial

import jax
import jax.numpy as jnp
from jax.experimental import pallas as pl
from jax.experimental.pallas import tpu as pltpu


# ---------------------------------------------------------------------------
# Kernel: normalize (precomputed scale/shift) + ReLU + 1x1 ConvT matmul +
#         fused nearest-2x upsample (per-row expansion matmul), bf16 output.
# ---------------------------------------------------------------------------
def _make_kernel(W, Th):
    def kernel(x_ref, scale_ref, shift_ref, wt_ref, u4_ref, o_ref):
        # x_ref    : (Cin, Th*W)  f32   -- Th full spatial rows of one sample
        # scale_ref: (Cin, 1)     f32   -- rstd           (per-channel)
        # shift_ref: (Cin, 1)     f32   -- -mean * rstd   (per-channel)
        # wt_ref   : (Cout, Cin)  bf16  -- pre-transposed ConvTranspose2d weight
        # u4_ref   : (W, 4*W)     bf16  -- 0/1 nearest-upsample expansion matrix
        # o_ref    : (Cout, 4*Th*W)     -- flat upsampled rows (bf16 by default)
        x = x_ref[...]
        y = jnp.maximum(x * scale_ref[...] + shift_ref[...], 0.0)   # f32 norm + ReLU
        yb = y.astype(jnp.bfloat16)
        # 1x1 ConvTranspose (stride 1, pad 0) == channel mix over Cin (MXU, f32 acc).
        z = jnp.dot(wt_ref[...], yb, preferred_element_type=jnp.float32)  # (Cout, Th*W)
        zb = z.astype(jnp.bfloat16)
        u4 = u4_ref[...]
        # Fused nearest-2x upsample: for each spatial row r, z_row @ U4 yields
        # [interleave(z_row) | interleave(z_row)] of length 4W, which is exactly
        # the two adjacent output rows (2h, 2h+1) in flat row-major (2H, 2W) order.
        for r in range(Th):                                   # Th <= 16, unrolled
            zr = zb[:, r * W:(r + 1) * W]                     # (Cout, W)  static slice
            up = jnp.dot(zr, u4, preferred_element_type=jnp.float32)   # (Cout, 4W)
            o_ref[:, r * 4 * W:(r + 1) * 4 * W] = up.astype(o_ref.dtype)

    return kernel


def _pick_rows_per_tile(H, W, target_lanes=2048, max_rows=16):
    """Largest divisor of H (<= max_rows) whose tile Th*W stays ~target_lanes."""
    best = 1
    for th in range(1, min(H, max_rows) + 1):
        if H % th == 0 and th * W <= max(target_lanes, W):
            best = th
    return best


def prepare_weight(w_convt):
    """PyTorch ConvTranspose2d weight (Cin, Cout, 1, 1) -> (Cout, Cin) bf16 (prep once)."""
    cin, cout = w_convt.shape[0], w_convt.shape[1]
    return jnp.transpose(w_convt.reshape(cin, cout), (1, 0)).astype(jnp.bfloat16)


def transition_block_forward(x, wt, out_dtype=jnp.bfloat16):
    """x: (B, Cin, H, W) f32 NCHW, wt: (Cout, Cin) bf16 -> (B, Cout, 2H, 2W) out_dtype."""
    B, Cin, H, W = x.shape
    Cout = wt.shape[0]
    HW = H * W
    Th = _pick_rows_per_tile(H, W)            # spatial rows per grid step
    Tl = Th * W                               # input lanes per grid step
    n_tiles = H // Th

    x2 = x.reshape(B, Cin, HW)                # metadata-only reshape (NCHW stays NCHW)

    # ---- Pass 1: per-(b, c) InstanceNorm stats, one fused XLA sweep over x (f32).
    # One-pass var = E[x^2] - E[x]^2 (clamped >= 0); eps=1e-5, biased, affine=False.
    m1 = jnp.mean(x2, axis=2)
    m2 = jnp.mean(jnp.square(x2), axis=2)
    var = jnp.maximum(m2 - jnp.square(m1), 0.0)
    rstd = jax.lax.rsqrt(var + 1e-5)
    scale = rstd.reshape(B, Cin, 1).astype(jnp.float32)
    shift = (-m1 * rstd).reshape(B, Cin, 1).astype(jnp.float32)

    # ---- 0/1 nearest-upsample expansion matrix U4: U4[w, j] = 1 iff (j mod 2W)//2 == w.
    j = jnp.arange(4 * W)
    wi = jnp.arange(W)
    u4 = (((j[None, :] % (2 * W)) // 2) == wi[:, None]).astype(jnp.bfloat16)

    # ---- Explicit VMEM budget: double-buffered in/out blocks + resident weights.
    out_elem = jnp.dtype(out_dtype).itemsize
    need = (2 * (Cin * Tl * 4                      # input block  (f32)
                 + Cout * 4 * Tl * out_elem        # output block
                 + 2 * Cin * 4 * 128)              # lane-padded scale/shift blocks
            + Cout * Cin * 2 + W * 4 * W * 2)      # resident weight + U4 (bf16)
    vmem_limit = int(min(64 << 20, max(32 << 20, 2 * need)))

    out = pl.pallas_call(
        _make_kernel(W, Th),
        out_shape=jax.ShapeDtypeStruct((B, Cout, 4 * HW), out_dtype),
        grid_spec=pltpu.PrefetchScalarGridSpec(
            num_scalar_prefetch=0,
            grid=(B, n_tiles),
            in_specs=[
                pl.BlockSpec((None, Cin, Tl), lambda b, t: (b, 0, t)),   # x rows
                pl.BlockSpec((None, Cin, 1), lambda b, t: (b, 0, 0)),    # scale
                pl.BlockSpec((None, Cin, 1), lambda b, t: (b, 0, 0)),    # shift
                pl.BlockSpec((Cout, Cin), lambda b, t: (0, 0)),          # weight (resident)
                pl.BlockSpec((W, 4 * W), lambda b, t: (0, 0)),           # U4     (resident)
            ],
            out_specs=pl.BlockSpec((None, Cout, 4 * Tl), lambda b, t: (b, 0, t)),
        ),
        compiler_params=pltpu.CompilerParams(
            dimension_semantics=("parallel", "parallel"),   # shards over both v7x cores
            vmem_limit_bytes=vmem_limit),
    )(x2, scale, shift, wt, u4)

    # Flat (B, Cout, H*4W) is exactly row-major (B, Cout, 2H, 2W): metadata-only reshape.
    return out.reshape(B, Cout, 2 * H, 2 * W)


# ---------------------------------------------------------------------------
# Pure-JAX reference (PyTorch semantics) for correctness checking
# ---------------------------------------------------------------------------
def reference_forward(x, w_convt):
    mean = x.mean(axis=(2, 3), keepdims=True)
    var = jnp.square(x - mean).mean(axis=(2, 3), keepdims=True)     # biased, eps=1e-5
    y = jnp.maximum((x - mean) / jnp.sqrt(var + 1e-5), 0.0)
    z = jnp.einsum("bihw,io->bohw", y, w_convt[:, :, 0, 0])
    return jnp.repeat(jnp.repeat(z, 2, axis=2), 2, axis=3)


if __name__ == "__main__":
    key = jax.random.PRNGKey(0)
    k1, k2 = jax.random.split(key)

    # Small shapes consistent with how TransitionBlock is used in the network.
    B, Cin, Cout, H, W = 2, 64, 64, 16, 16
    x = jax.random.normal(k1, (B, Cin, H, W), jnp.float32)                 # NCHW
    w = jax.random.normal(k2, (Cin, Cout, 1, 1), jnp.float32) / math.sqrt(Cin)

    wt = prepare_weight(w)                       # weight prep hoisted out of hot path
    fwd = jax.jit(transition_block_forward)
    out = jax.block_until_ready(fwd(x, wt))

    assert out.shape == (B, Cout, 2 * H, 2 * W), out.shape
    out_f32 = jnp.asarray(out, jnp.float32)
    assert bool(jnp.all(jnp.isfinite(out_f32)))

    ref = reference_forward(x, w)
    max_err = float(jnp.max(jnp.abs(out_f32 - ref)))
    assert max_err < 5e-2, f"max abs error vs reference: {max_err}"

    print("KERNEL_OK")
</pallas_src>

<mosaic_0001>
module attributes {stable_mosaic.version = 11 : i64} {
  func.func @kernel(%arg0: i32, %arg1: i32, %arg2: memref<1x64x256xf32, #tpu.memory_space<vmem>>, %arg3: memref<1x64x1xf32, #tpu.memory_space<vmem>>, %arg4: memref<1x64x1xf32, #tpu.memory_space<vmem>>, %arg5: memref<64x64xbf16, #tpu.memory_space<vmem>>, %arg6: memref<16x64xbf16, #tpu.memory_space<vmem>>, %arg7: memref<1x64x1024xbf16, #tpu.memory_space<vmem>>) attributes {dimension_semantics = [#tpu.dimension_semantics<parallel>, #tpu.dimension_semantics<parallel>], iteration_bounds = array<i64: 2, 1>, scalar_prefetch = 0 : i64, scratch_operands = 0 : i64, tpu.core_type = #tpu.core_type<tc>, window_params = [{transform_indices = @transform_0, window_bounds = array<i64: 1, 64, 256>}, {transform_indices = @transform_1, window_bounds = array<i64: 1, 64, 1>}, {transform_indices = @transform_2, window_bounds = array<i64: 1, 64, 1>}, {pipeline_mode = #tpu.pipeline_mode<synchronous>, transform_indices = @transform_3, window_bounds = array<i64: 64, 64>}, {pipeline_mode = #tpu.pipeline_mode<synchronous>, transform_indices = @transform_4, window_bounds = array<i64: 16, 64>}, {transform_indices = @transform_5, window_bounds = array<i64: 1, 64, 1024>}]} {
    %c0 = arith.constant 0 : index
    %c0_0 = arith.constant 0 : index
    %c0_1 = arith.constant 0 : index
    %0 = vector.load %arg2[%c0, %c0_0, %c0_1] : memref<1x64x256xf32, #tpu.memory_space<vmem>>, vector<1x64x256xf32>
    %1 = vector.shape_cast %0 : vector<1x64x256xf32> to vector<64x256xf32>
    %c0_2 = arith.constant 0 : index
    %c0_3 = arith.constant 0 : index
    %c0_4 = arith.constant 0 : index
    %2 = vector.load %arg3[%c0_2, %c0_3, %c0_4] : memref<1x64x1xf32, #tpu.memory_space<vmem>>, vector<1x64x1xf32>
    %3 = vector.shape_cast %2 : vector<1x64x1xf32> to vector<64x1xf32>
    %4 = vector.broadcast %3 : vector<64x1xf32> to vector<64x256xf32>
    %5 = arith.mulf %1, %4 : vector<64x256xf32>
    %c0_5 = arith.constant 0 : index
    %c0_6 = arith.constant 0 : index
    %c0_7 = arith.constant 0 : index
    %6 = vector.load %arg4[%c0_5, %c0_6, %c0_7] : memref<1x64x1xf32, #tpu.memory_space<vmem>>, vector<1x64x1xf32>
    %7 = vector.shape_cast %6 : vector<1x64x1xf32> to vector<64x1xf32>
    %8 = vector.broadcast %7 : vector<64x1xf32> to vector<64x256xf32>
    %9 = arith.addf %5, %8 : vector<64x256xf32>
    %cst = arith.constant 0.000000e+00 : f32
    %10 = vector.broadcast %cst : f32 to vector<64x256xf32>
    %11 = arith.maximumf %9, %10 : vector<64x256xf32>
    %12 = arith.truncf %11 : vector<64x256xf32> to vector<64x256xbf16>
    %c0_8 = arith.constant 0 : index
    %c0_9 = arith.constant 0 : index
    %13 = vector.load %arg5[%c0_8, %c0_9] : memref<64x64xbf16, #tpu.memory_space<vmem>>, vector<64x64xbf16>
    %cst_10 = arith.constant dense<0.000000e+00> : vector<64x256xf32>
    %14 = tpu.matmul %13, %12, %cst_10 {dimension_numbers = #tpu.dot_dimension_numbers<[1], [0], [0], [1], [0, 0, 1, 1], [], []>} : vector<64x64xbf16>, vector<64x256xbf16>, vector<64x256xf32> -> vector<64x256xf32>
    %15 = arith.truncf %14 : vector<64x256xf32> to vector<64x256xbf16>
    %c0_11 = arith.constant 0 : index
    %c0_12 = arith.constant 0 : index
    %16 = vector.load %arg6[%c0_11, %c0_12] : memref<16x64xbf16, #tpu.memory_space<vmem>>, vector<16x64xbf16>
    %17 = vector.extract_strided_slice %15 {offsets = [0, 0], sizes = [64, 16], strides = [1, 1]} : vector<64x256xbf16> to vector<64x16xbf16>
    %cst_13 = arith.constant dense<0.000000e+00> : vector<64x64xf32>
    %18 = tpu.matmul %17, %16, %cst_13 {dimension_numbers = #tpu.dot_dimension_numbers<[1], [0], [0], [1], [0, 0, 1, 1], [], []>} : vector<64x16xbf16>, vector<16x64xbf16>, vector<64x64xf32> -> vector<64x64xf32>
    %19 = arith.truncf %18 : vector<64x64xf32> to vector<64x64xbf16>
    %c0_14 = arith.constant 0 : index
    %c0_15 = arith.constant 0 : index
    %c0_16 = arith.constant 0 : index
    %20 = vector.load %arg7[%c0_14, %c0_15, %c0_16] : memref<1x64x1024xbf16, #tpu.memory_space<vmem>>, vector<1x64x64xbf16>
    %21 = vector.shape_cast %20 : vector<1x64x64xbf16> to vector<64x64xbf16>
    %22 = vector.shape_cast %19 : vector<64x64xbf16> to vector<1x64x64xbf16>
    tpu.vector_store %arg7[%c0_14, %c0_15, %c0_16], %22 {strides = array<i32>} : memref<1x64x1024xbf16, #tpu.memory_space<vmem>>, vector<1x64x64xbf16>,
    %23 = vector.extract_strided_slice %15 {offsets = [0, 16], sizes = [64, 16], strides = [1, 1]} : vector<64x256xbf16> to vector<64x16xbf16>
    %cst_17 = arith.constant dense<0.000000e+00> : vector<64x64xf32>
    %24 = tpu.matmul %23, %16, %cst_17 {dimension_numbers = #tpu.dot_dimension_numbers<[1], [0], [0], [1], [0, 0, 1, 1], [], []>} : vector<64x16xbf16>, vector<16x64xbf16>, vector<64x64xf32> -> vector<64x64xf32>
    %25 = arith.truncf %24 : vector<64x64xf32> to vector<64x64xbf16>
    %c0_18 = arith.constant 0 : index
    %c0_19 = arith.constant 0 : index
    %c64 = arith.constant 64 : index
    %26 = vector.load %arg7[%c0_18, %c0_19, %c64] : memref<1x64x1024xbf16, #tpu.memory_space<vmem>>, vector<1x64x64xbf16>
    %27 = vector.shape_cast %26 : vector<1x64x64xbf16> to vector<64x64xbf16>
    %28 = vector.shape_cast %25 : vector<64x64xbf16> to vector<1x64x64xbf16>
    tpu.vector_store %arg7[%c0_18, %c0_19, %c64], %28 {strides = array<i32>} : memref<1x64x1024xbf16, #tpu.memory_space<vmem>>, vector<1x64x64xbf16>,
    %29 = vector.extract_strided_slice %15 {offsets = [0, 32], sizes = [64, 16], strides = [1, 1]} : vector<64x256xbf16> to vector<64x16xbf16>
    %cst_20 = arith.constant dense<0.000000e+00> : vector<64x64xf32>
    %30 = tpu.matmul %29, %16, %cst_20 {dimension_numbers = #tpu.dot_dimension_numbers<[1], [0], [0], [1], [0, 0, 1, 1], [], []>} : vector<64x16xbf16>, vector<16x64xbf16>, vector<64x64xf32> -> vector<64x64xf32>
    %31 = arith.truncf %30 : vector<64x64xf32> to vector<64x64xbf16>
    %c0_21 = arith.constant 0 : index
    %c0_22 = arith.constant 0 : index
    %c128 = arith.constant 128 : index
    %32 = vector.load %arg7[%c0_21, %c0_22, %c128] : memref<1x64x1024xbf16, #tpu.memory_space<vmem>>, vector<1x64x64xbf16>
    %33 = vector.shape_cast %32 : vector<1x64x64xbf16> to vector<64x64xbf16>
    %34 = vector.shape_cast %31 : vector<64x64xbf16> to vector<1x64x64xbf16>
    tpu.vector_store %arg7[%c0_21, %c0_22, %c128], %34 {strides = array<i32>} : memref<1x64x1024xbf16, #tpu.memory_space<vmem>>, vector<1x64x64xbf16>,
    %35 = vector.extract_strided_slice %15 {offsets = [0, 48], sizes = [64, 16], strides = [1, 1]} : vector<64x256xbf16> to vector<64x16xbf16>
    %cst_23 = arith.constant dense<0.000000e+00> : vector<64x64xf32>
    %36 = tpu.matmul %35, %16, %cst_23 {dimension_numbers = #tpu.dot_dimension_numbers<[1], [0], [0], [1], [0, 0, 1, 1], [], []>} : vector<64x16xbf16>, vector<16x64xbf16>, vector<64x64xf32> -> vector<64x64xf32>
    %37 = arith.truncf %36 : vector<64x64xf32> to vector<64x64xbf16>
    %c0_24 = arith.constant 0 : index
    %c0_25 = arith.constant 0 : index
    %c192 = arith.constant 192 : index
    %38 = vector.load %arg7[%c0_24, %c0_25, %c192] : memref<1x64x1024xbf16, #tpu.memory_space<vmem>>, vector<1x64x64xbf16>
    %39 = vector.shape_cast %38 : vector<1x64x64xbf16> to vector<64x64xbf16>
    %40 = vector.shape_cast %37 : vector<64x64xbf16> to vector<1x64x64xbf16>
    tpu.vector_store %arg7[%c0_24, %c0_25, %c192], %40 {strides = array<i32>} : memref<1x64x1024xbf16, #tpu.memory_space<vmem>>, vector<1x64x64xbf16>,
    %41 = vector.extract_strided_slice %15 {offsets = [0, 64], sizes = [64, 16], strides = [1, 1]} : vector<64x256xbf16> to vector<64x16xbf16>
    %cst_26 = arith.constant dense<0.000000e+00> : vector<64x64xf32>
    %42 = tpu.matmul %41, %16, %cst_26 {dimension_numbers = #tpu.dot_dimension_numbers<[1], [0], [0], [1], [0, 0, 1, 1], [], []>} : vector<64x16xbf16>, vector<16x64xbf16>, vector<64x64xf32> -> vector<64x64xf32>
    %43 = arith.truncf %42 : vector<64x64xf32> to vector<64x64xbf16>
    %c0_27 = arith.constant 0 : index
    %c0_28 = arith.constant 0 : index
    %c256 = arith.constant 256 : index
    %44 = vector.load %arg7[%c0_27, %c0_28, %c256] : memref<1x64x1024xbf16, #tpu.memory_space<vmem>>, vector<1x64x64xbf16>
    %45 = vector.shape_cast %44 : vector<1x64x64xbf16> to vector<64x64xbf16>
    %46 = vector.shape_cast %43 : vector<64x64xbf16> to vector<1x64x64xbf16>
    tpu.vector_store %arg7[%c0_27, %c0_28, %c256], %46 {strides = array<i32>} : memref<1x64x1024xbf16, #tpu.memory_space<vmem>>, vector<1x64x64xbf16>,
    %47 = vector.extract_strided_slice %15 {offsets = [0, 80], sizes = [64, 16], strides = [1, 1]} : vector<64x256xbf16> to vector<64x16xbf16>
    %cst_29 = arith.constant dense<0.000000e+00> : vector<64x64xf32>
    %48 = tpu.matmul %47, %16, %cst_29 {dimension_numbers = #tpu.dot_dimension_numbers<[1], [0], [0], [1], [0, 0, 1, 1], [], []>} : vector<64x16xbf16>, vector<16x64xbf16>, vector<64x64xf32> -> vector<64x64xf32>
    %49 = arith.truncf %48 : vector<64x64xf32> to vector<64x64xbf16>
    %c0_30 = arith.constant 0 : index
    %c0_31 = arith.constant 0 : index
    %c320 = arith.constant 320 : index
    %50 = vector.load %arg7[%c0_30, %c0_31, %c320] : memref<1x64x1024xbf16, #tpu.memory_space<vmem>>, vector<1x64x64xbf16>
    %51 = vector.shape_cast %50 : vector<1x64x64xbf16> to vector<64x64xbf16>
    %52 = vector.shape_cast %49 : vector<64x64xbf16> to vector<1x64x64xbf16>
    tpu.vector_store %arg7[%c0_30, %c0_31, %c320], %52 {strides = array<i32>} : memref<1x64x1024xbf16, #tpu.memory_space<vmem>>, vector<1x64x64xbf16>,
    %53 = vector.extract_strided_slice %15 {offsets = [0, 96], sizes = [64, 16], strides = [1, 1]} : vector<64x256xbf16> to vector<64x16xbf16>
    %cst_32 = arith.constant dense<0.000000e+00> : vector<64x64xf32>
    %54 = tpu.matmul %53, %16, %cst_32 {dimension_numbers = #tpu.dot_dimension_numbers<[1], [0], [0], [1], [0, 0, 1, 1], [], []>} : vector<64x16xbf16>, vector<16x64xbf16>, vector<64x64xf32> -> vector<64x64xf32>
    %55 = arith.truncf %54 : vector<64x64xf32> to vector<64x64xbf16>
    %c0_33 = arith.constant 0 : index
    %c0_34 = arith.constant 0 : index
    %c384 = arith.constant 384 : index
    %56 = vector.load %arg7[%c0_33, %c0_34, %c384] : memref<1x64x1024xbf16, #tpu.memory_space<vmem>>, vector<1x64x64xbf16>
    %57 = vector.shape_cast %56 : vector<1x64x64xbf16> to vector<64x64xbf16>
    %58 = vector.shape_cast %55 : vector<64x64xbf16> to vector<1x64x64xbf16>
    tpu.vector_store %arg7[%c0_33, %c0_34, %c384], %58 {strides = array<i32>} : memref<1x64x1024xbf16, #tpu.memory_space<vmem>>, vector<1x64x64xbf16>,
    %59 = vector.extract_strided_slice %15 {offsets = [0, 112], sizes = [64, 16], strides = [1, 1]} : vector<64x256xbf16> to vector<64x16xbf16>
    %cst_35 = arith.constant dense<0.000000e+00> : vector<64x64xf32>
    %60 = tpu.matmul %59, %16, %cst_35 {dimension_numbers = #tpu.dot_dimension_numbers<[1], [0], [0], [1], [0, 0, 1, 1], [], []>} : vector<64x16xbf16>, vector<16x64xbf16>, vector<64x64xf32> -> vector<64x64xf32>
    %61 = arith.truncf %60 : vector<64x64xf32> to vector<64x64xbf16>
    %c0_36 = arith.constant 0 : index
    %c0_37 = arith.constant 0 : index
    %c448 = arith.constant 448 : index
    %62 = vector.load %arg7[%c0_36, %c0_37, %c448] : memref<1x64x1024xbf16, #tpu.memory_space<vmem>>, vector<1x64x64xbf16>
    %63 = vector.shape_cast %62 : vector<1x64x64xbf16> to vector<64x64xbf16>
    %64 = vector.shape_cast %61 : vector<64x64xbf16> to vector<1x64x64xbf16>
    tpu.vector_store %arg7[%c0_36, %c0_37, %c448], %64 {strides = array<i32>} : memref<1x64x1024xbf16, #tpu.memory_space<vmem>>, vector<1x64x64xbf16>,
    %65 = vector.extract_strided_slice %15 {offsets = [0, 128], sizes = [64, 16], strides = [1, 1]} : vector<64x256xbf16> to vector<64x16xbf16>
    %cst_38 = arith.constant dense<0.000000e+00> : vector<64x64xf32>
    %66 = tpu.matmul %65, %16, %cst_38 {dimension_numbers = #tpu.dot_dimension_numbers<[1], [0], [0], [1], [0, 0, 1, 1], [], []>} : vector<64x16xbf16>, vector<16x64xbf16>, vector<64x64xf32> -> vector<64x64xf32>
    %67 = arith.truncf %66 : vector<64x64xf32> to vector<64x64xbf16>
    %c0_39 = arith.constant 0 : index
    %c0_40 = arith.constant 0 : index
    %c512 = arith.constant 512 : index
    %68 = vector.load %arg7[%c0_39, %c0_40, %c512] : memref<1x64x1024xbf16, #tpu.memory_space<vmem>>, vector<1x64x64xbf16>
    %69 = vector.shape_cast %68 : vector<1x64x64xbf16> to vector<64x64xbf16>
    %70 = vector.shape_cast %67 : vector<64x64xbf16> to vector<1x64x64xbf16>
    tpu.vector_store %arg7[%c0_39, %c0_40, %c512], %70 {strides = array<i32>} : memref<1x64x1024xbf16, #tpu.memory_space<vmem>>, vector<1x64x64xbf16>,
    %71 = vector.extract_strided_slice %15 {offsets = [0, 144], sizes = [64, 16], strides = [1, 1]} : vector<64x256xbf16> to vector<64x16xbf16>
    %cst_41 = arith.constant dense<0.000000e+00> : vector<64x64xf32>
    %72 = tpu.matmul %71, %16, %cst_41 {dimension_numbers = #tpu.dot_dimension_numbers<[1], [0], [0], [1], [0, 0, 1, 1], [], []>} : vector<64x16xbf16>, vector<16x64xbf16>, vector<64x64xf32> -> vector<64x64xf32>
    %73 = arith.truncf %72 : vector<64x64xf32> to vector<64x64xbf16>
    %c0_42 = arith.constant 0 : index
    %c0_43 = arith.constant 0 : index
    %c576 = arith.constant 576 : index
    %74 = vector.load %arg7[%c0_42, %c0_43, %c576] : memref<1x64x1024xbf16, #tpu.memory_space<vmem>>, vector<1x64x64xbf16>
    %75 = vector.shape_cast %74 : vector<1x64x64xbf16> to vector<64x64xbf16>
    %76 = vector.shape_cast %73 : vector<64x64xbf16> to vector<1x64x64xbf16>
    tpu.vector_store %arg7[%c0_42, %c0_43, %c576], %76 {strides = array<i32>} : memref<1x64x1024xbf16, #tpu.memory_space<vmem>>, vector<1x64x64xbf16>,
    %77 = vector.extract_strided_slice %15 {offsets = [0, 160], sizes = [64, 16], strides = [1, 1]} : vector<64x256xbf16> to vector<64x16xbf16>
    %cst_44 = arith.constant dense<0.000000e+00> : vector<64x64xf32>
    %78 = tpu.matmul %77, %16, %cst_44 {dimension_numbers = #tpu.dot_dimension_numbers<[1], [0], [0], [1], [0, 0, 1, 1], [], []>} : vector<64x16xbf16>, vector<16x64xbf16>, vector<64x64xf32> -> vector<64x64xf32>
    %79 = arith.truncf %78 : vector<64x64xf32> to vector<64x64xbf16>
    %c0_45 = arith.constant 0 : index
    %c0_46 = arith.constant 0 : index
    %c640 = arith.constant 640 : index
    %80 = vector.load %arg7[%c0_45, %c0_46, %c640] : memref<1x64x1024xbf16, #tpu.memory_space<vmem>>, vector<1x64x64xbf16>
    %81 = vector.shape_cast %80 : vector<1x64x64xbf16> to vector<64x64xbf16>
    %82 = vector.shape_cast %79 : vector<64x64xbf16> to vector<1x64x64xbf16>
    tpu.vector_store %arg7[%c0_45, %c0_46, %c640], %82 {strides = array<i32>} : memref<1x64x1024xbf16, #tpu.memory_space<vmem>>, vector<1x64x64xbf16>,
    %83 = vector.extract_strided_slice %15 {offsets = [0, 176], sizes = [64, 16], strides = [1, 1]} : vector<64x256xbf16> to vector<64x16xbf16>
    %cst_47 = arith.constant dense<0.000000e+00> : vector<64x64xf32>
    %84 = tpu.matmul %83, %16, %cst_47 {dimension_numbers = #tpu.dot_dimension_numbers<[1], [0], [0], [1], [0, 0, 1, 1], [], []>} : vector<64x16xbf16>, vector<16x64xbf16>, vector<64x64xf32> -> vector<64x64xf32>
    %85 = arith.truncf %84 : vector<64x64xf32> to vector<64x64xbf16>
    %c0_48 = arith.constant 0 : index
    %c0_49 = arith.constant 0 : index
    %c704 = arith.constant 704 : index
    %86 = vector.load %arg7[%c0_48, %c0_49, %c704] : memref<1x64x1024xbf16, #tpu.memory_space<vmem>>, vector<1x64x64xbf16>
    %87 = vector.shape_cast %86 : vector<1x64x64xbf16> to vector<64x64xbf16>
    %88 = vector.shape_cast %85 : vector<64x64xbf16> to vector<1x64x64xbf16>
    tpu.vector_store %arg7[%c0_48, %c0_49, %c704], %88 {strides = array<i32>} : memref<1x64x1024xbf16, #tpu.memory_space<vmem>>, vector<1x64x64xbf16>,
    %89 = vector.extract_strided_slice %15 {offsets = [0, 192], sizes = [64, 16], strides = [1, 1]} : vector<64x256xbf16> to vector<64x16xbf16>
    %cst_50 = arith.constant dense<0.000000e+00> : vector<64x64xf32>
    %90 = tpu.matmul %89, %16, %cst_50 {dimension_numbers = #tpu.dot_dimension_numbers<[1], [0], [0], [1], [0, 0, 1, 1], [], []>} : vector<64x16xbf16>, vector<16x64xbf16>, vector<64x64xf32> -> vector<64x64xf32>
    %91 = arith.truncf %90 : vector<64x64xf32> to vector<64x64xbf16>
    %c0_51 = arith.constant 0 : index
    %c0_52 = arith.constant 0 : index
    %c768 = arith.constant 768 : index
    %92 = vector.load %arg7[%c0_51, %c0_52, %c768] : memref<1x64x1024xbf16, #tpu.memory_space<vmem>>, vector<1x64x64xbf16>
    %93 = vector.shape_cast %92 : vector<1x64x64xbf16> to vector<64x64xbf16>
    %94 = vector.shape_cast %91 : vector<64x64xbf16> to vector<1x64x64xbf16>
    tpu.vector_store %arg7[%c0_51, %c0_52, %c768], %94 {strides = array<i32>} : memref<1x64x1024xbf16, #tpu.memory_space<vmem>>, vector<1x64x64xbf16>,
    %95 = vector.extract_strided_slice %15 {offsets = [0, 208], sizes = [64, 16], strides = [1, 1]} : vector<64x256xbf16> to vector<64x16xbf16>
    %cst_53 = arith.constant dense<0.000000e+00> : vector<64x64xf32>
    %96 = tpu.matmul %95, %16, %cst_53 {dimension_numbers = #tpu.dot_dimension_numbers<[1], [0], [0], [1], [0, 0, 1, 1], [], []>} : vector<64x16xbf16>, vector<16x64xbf16>, vector<64x64xf32> -> vector<64x64xf32>
    %97 = arith.truncf %96 : vector<64x64xf32> to vector<64x64xbf16>
    %c0_54 = arith.constant 0 : index
    %c0_55 = arith.constant 0 : index
    %c832 = arith.constant 832 : index
    %98 = vector.load %arg7[%c0_54, %c0_55, %c832] : memref<1x64x1024xbf16, #tpu.memory_space<vmem>>, vector<1x64x64xbf16>
    %99 = vector.shape_cast %98 : vector<1x64x64xbf16> to vector<64x64xbf16>
    %100 = vector.shape_cast %97 : vector<64x64xbf16> to vector<1x64x64xbf16>
    tpu.vector_store %arg7[%c0_54, %c0_55, %c832], %100 {strides = array<i32>} : memref<1x64x1024xbf16, #tpu.memory_space<vmem>>, vector<1x64x64xbf16>,
    %101 = vector.extract_strided_slice %15 {offsets = [0, 224], sizes = [64, 16], strides = [1, 1]} : vector<64x256xbf16> to vector<64x16xbf16>
    %cst_56 = arith.constant dense<0.000000e+00> : vector<64x64xf32>
    %102 = tpu.matmul %101, %16, %cst_56 {dimension_numbers = #tpu.dot_dimension_numbers<[1], [0], [0], [1], [0, 0, 1, 1], [], []>} : vector<64x16xbf16>, vector<16x64xbf16>, vector<64x64xf32> -> vector<64x64xf32>
    %103 = arith.truncf %102 : vector<64x64xf32> to vector<64x64xbf16>
    %c0_57 = arith.constant 0 : index
    %c0_58 = arith.constant 0 : index
    %c896 = arith.constant 896 : index
    %104 = vector.load %arg7[%c0_57, %c0_58, %c896] : memref<1x64x1024xbf16, #tpu.memory_space<vmem>>, vector<1x64x64xbf16>
    %105 = vector.shape_cast %104 : vector<1x64x64xbf16> to vector<64x64xbf16>
    %106 = vector.shape_cast %103 : vector<64x64xbf16> to vector<1x64x64xbf16>
    tpu.vector_store %arg7[%c0_57, %c0_58, %c896], %106 {strides = array<i32>} : memref<1x64x1024xbf16, #tpu.memory_space<vmem>>, vector<1x64x64xbf16>,
    %107 = vector.extract_strided_slice %15 {offsets = [0, 240], sizes = [64, 16], strides = [1, 1]} : vector<64x256xbf16> to vector<64x16xbf16>
    %cst_59 = arith.constant dense<0.000000e+00> : vector<64x64xf32>
    %108 = tpu.matmul %107, %16, %cst_59 {dimension_numbers = #tpu.dot_dimension_numbers<[1], [0], [0], [1], [0, 0, 1, 1], [], []>} : vector<64x16xbf16>, vector<16x64xbf16>, vector<64x64xf32> -> vector<64x64xf32>
    %109 = arith.truncf %108 : vector<64x64xf32> to vector<64x64xbf16>
    %c0_60 = arith.constant 0 : index
    %c0_61 = arith.constant 0 : index
    %c960 = arith.constant 960 : index
    %110 = vector.load %arg7[%c0_60, %c0_61, %c960] : memref<1x64x1024xbf16, #tpu.memory_space<vmem>>, vector<1x64x64xbf16>
    %111 = vector.shape_cast %110 : vector<1x64x64xbf16> to vector<64x64xbf16>
    %112 = vector.shape_cast %109 : vector<64x64xbf16> to vector<1x64x64xbf16>
    tpu.vector_store %arg7[%c0_60, %c0_61, %c960], %112 {strides = array<i32>} : memref<1x64x1024xbf16, #tpu.memory_space<vmem>>, vector<1x64x64xbf16>,
    return
  }
  func.func @transform_0(%arg0: i32, %arg1: i32) -> (i32, i32, i32) {
    %c0_i32 = arith.constant 0 : i32
    %c0_i32_0 = arith.constant 0 : i32
    return %arg0, %c0_i32, %arg1 : i32, i32, i32
  }
  func.func @transform_1(%arg0: i32, %arg1: i32) -> (i32, i32, i32) {
    %c0_i32 = arith.constant 0 : i32
    %c0_i32_0 = arith.constant 0 : i32
    %c0_i32_1 = arith.constant 0 : i32
    return %arg0, %c0_i32, %c0_i32_0 : i32, i32, i32
  }
  func.func @transform_2(%arg0: i32, %arg1: i32) -> (i32, i32, i32) {
    %c0_i32 = arith.constant 0 : i32
    %c0_i32_0 = arith.constant 0 : i32
    %c0_i32_1 = arith.constant 0 : i32
    return %arg0, %c0_i32, %c0_i32_0 : i32, i32, i32
  }
  func.func @transform_3(%arg0: i32, %arg1: i32) -> (i32, i32) {
    %c0_i32 = arith.constant 0 : i32
    %c0_i32_0 = arith.constant 0 : i32
    %c0_i32_1 = arith.constant 0 : i32
    return %c0_i32, %c0_i32_0 : i32, i32
  }
  func.func @transform_4(%arg0: i32, %arg1: i32) -> (i32, i32) {
    %c0_i32 = arith.constant 0 : i32
    %c0_i32_0 = arith.constant 0 : i32
    %c0_i32_1 = arith.constant 0 : i32
    return %c0_i32, %c0_i32_0 : i32, i32
  }
  func.func @transform_5(%arg0: i32, %arg1: i32) -> (i32, i32, i32) {
    %c0_i32 = arith.constant 0 : i32
    %c0_i32_0 = arith.constant 0 : i32
    return %arg0, %c0_i32, %arg1 : i32, i32, i32
  }
}

</mosaic_0001>

<llo_original>
// kernel: transition_block_forward.1
$region0: #{transition_block_forward.1}
  #allocation0 [shape = 'u32[]', space=smem, size = 0x4, offset = 0x4, fixed_abs, tag = 'smem constant byte address 0x4 - core index']
  #allocation1 [shape = 'u32[144,128]{1,0:T(1,128)}', space=vmem, size = 0x12000, scoped, tag = 'internal scratch']
  %s0 = inlined_call_operand.vmem [shape: f32[2,64,256], index: 0, kind: input, shape index: {}]
  %s1 = inlined_call_operand.vmem [shape: f32[2,64,1], index: 1, kind: input, shape index: {}]
  %s2 = inlined_call_operand.vmem [shape: f32[2,64,1], index: 2, kind: input, shape index: {}]
  %s3 = inlined_call_operand.vmem [shape: bf16[64,64], index: 3, kind: input, shape index: {}]
  %s4 = inlined_call_operand.vmem [shape: bf16[16,64], index: 4, kind: input, shape index: {}]
  %s5 = inlined_call_operand.vmem [shape: bf16[2,64,1024], index: 5, kind: output, shape index: {}]
  %s6 = sld [smem:[#allocation0]]
  $region53: #{transition_block_forward.1} parent=0
    _
  %s8 = ssub.s32 1, %s6
  %s9 = scalar_select 0, %s8, %s6
  loop: start=0, step=1, limit=4
  $region2: #{transition_block_forward.1} parent=0 // loop_pre_header
    _
  $region3: #{transition_block_forward.1} parent=0 // loop_header
    %s11 = sphi 0, %s15
    %p12 = scmp.ge.s32.totalorder %s11, 4
    %s18 = sphi 0, %s30
    %s19 = sphi 0, %s26
    %s20 = sphi 0, %s18
    %s21 = sphi 0, %s19
    %s22 = sphi 0, %s20
    %s23 = sphi 0, %s21
    %s35 = sphi 0, %s37
    %s38 = sphi 0, %s35
    %s39 = sphi 0, %s38
    %s55 = sphi 0, %s39
    %s61 = sphi 0, %s63
    %s64 = sphi 0, %s61
    %s65 = sphi 0, %s64
    %s81 = sphi 0, %s65
    %s87 = sphi 0, %s89
    %s90 = sphi 0, %s87
    %s91 = sphi 0, %s90
    %s107 = sphi 0, %s91
    %s111 = sphi 0, %s111
    %s113 = sphi 0, %s111
    %s114 = sphi 0, %s113
    %s128 = sphi 0, %s114
    %s132 = sphi 0, %s132
    %s134 = sphi 0, %s132
    %s135 = sphi 0, %s134
    %s149 = sphi 0, %s135
    %s157 = sphi 0, %s159
    %s160 = sphi 0, %s157
    %s161 = sphi 0, %s160
    %s177 = sphi 0, %s161
  $region4: #{transition_block_forward.1} parent=0 // loop_header_branch
    %14 = sbr.rel (%p12) target = $region8
  $region5: #{transition_block_forward.1} parent=0 // loop_body
    %s16 = ssub.s32 %s11, 1
    %s17 = ssub.s32 %s11, 2
    %s24 = sadd.s32 1, %s19
    %p25 = scmp.ge.s32.totalorder %s24, 1
    %s26 = scalar_select %p25, 0, %s24
    %s27 = sadd.s32 1, %s18
    %s28 = scalar_select %p25, %s27, %s18
    %p29 = scmp.ge.s32.totalorder %s28, 2
    %s30 = scalar_select %p29, 0, %s28
    %s31 = ssub.s32 %s18, %s30
    %s32 = ssub.s32 %s19, %s26
    %s33 = sor.u32 %s31, %s32
    %p34 = scmp.eq.s32.totalorder %s33, 0
    %s36 = sadd.s32 %s35, 1
    %s37 = scalar_select %p34, %s35, %s36
    %p40 = pneg %p34
    %p41 = scmp.eq.s32.totalorder %s11, 1
    %p42 = por %p40, %p41
    %p43 = scmp.ne.s32.totalorder %s35, %s38
    %p44 = scmp.eq.s32.totalorder %s11, 0
    %p45 = por %p43, %p44
    %p46 = scmp.ne.s32.totalorder %s35, %s38
    %p47 = scmp.eq.s32.totalorder %s16, 1
    %p48 = por %p46, %p47
    %p49 = scmp.ne.s32.totalorder %s38, %s39
    %p50 = scmp.eq.s32.totalorder %s16, 0
    %p51 = por %p49, %p50
    %p52 = scmp.ne.s32.totalorder %s38, %s39
    %p53 = scmp.eq.s32.totalorder %s17, 1
    %p54 = por %p52, %p53
    %p56 = scmp.ne.s32.totalorder %s39, %s55
    %p57 = scmp.eq.s32.totalorder %s17, 0
    %p58 = por %p56, %p57
    %s59 = ssub.s32 %s18, %s30
    %p60 = scmp.eq.s32.totalorder %s59, 0
    %s62 = sadd.s32 %s61, 1
    %s63 = scalar_select %p60, %s61, %s62
    %p66 = pneg %p60
    %p67 = scmp.eq.s32.totalorder %s11, 1
    %p68 = por %p66, %p67
    %p69 = scmp.ne.s32.totalorder %s61, %s64
    %p70 = scmp.eq.s32.totalorder %s11, 0
    %p71 = por %p69, %p70
    %p72 = scmp.ne.s32.totalorder %s61, %s64
    %p73 = scmp.eq.s32.totalorder %s16, 1
    %p74 = por %p72, %p73
    %p75 = scmp.ne.s32.totalorder %s64, %s65
    %p76 = scmp.eq.s32.totalorder %s16, 0
    %p77 = por %p75, %p76
    %p78 = scmp.ne.s32.totalorder %s64, %s65
    %p79 = scmp.eq.s32.totalorder %s17, 1
    %p80 = por %p78, %p79
    %p82 = scmp.ne.s32.totalorder %s65, %s81
    %p83 = scmp.eq.s32.totalorder %s17, 0
    %p84 = por %p82, %p83
    %s85 = ssub.s32 %s18, %s30
    %p86 = scmp.eq.s32.totalorder %s85, 0
    %s88 = sadd.s32 %s87, 1
    %s89 = scalar_select %p86, %s87, %s88
    %p92 = pneg %p86
    %p93 = scmp.eq.s32.totalorder %s11, 1
    %p94 = por %p92, %p93
    %p95 = scmp.ne.s32.totalorder %s87, %s90
    %p96 = scmp.eq.s32.totalorder %s11, 0
    %p97 = por %p95, %p96
    %p98 = scmp.ne.s32.totalorder %s87, %s90
    %p99 = scmp.eq.s32.totalorder %s16, 1
    %p100 = por %p98, %p99
    %p101 = scmp.ne.s32.totalorder %s90, %s91
    %p102 = scmp.eq.s32.totalorder %s16, 0
    %p103 = por %p101, %p102
    %p104 = scmp.ne.s32.totalorder %s90, %s91
    %p105 = scmp.eq.s32.totalorder %s17, 1
    %p106 = por %p104, %p105
    %p108 = scmp.ne.s32.totalorder %s91, %s107
    %p109 = scmp.eq.s32.totalorder %s17, 0
    %p110 = por %p108, %p109
    %s112 = sadd.s32 %s111, 1
    %p115 = scmp.eq.s32.totalorder %s11, 1
    %p116 = scmp.ne.s32.totalorder %s111, %s113
    %p117 = scmp.eq.s32.totalorder %s11, 0
    %p118 = por %p116, %p117
    %p119 = scmp.ne.s32.totalorder %s111, %s113
    %p120 = scmp.eq.s32.totalorder %s16, 1
    %p121 = por %p119, %p120
    %p122 = scmp.ne.s32.totalorder %s113, %s114
    %p123 = scmp.eq.s32.totalorder %s16, 0
    %p124 = por %p122, %p123
    %p125 = scmp.ne.s32.totalorder %s113, %s114
    %p126 = scmp.eq.s32.totalorder %s17, 1
    %p127 = por %p125, %p126
    %p129 = scmp.ne.s32.totalorder %s114, %s128
    %p130 = scmp.eq.s32.totalorder %s17, 0
    %p131 = por %p129, %p130
    %s133 = sadd.s32 %s132, 1
    %p136 = scmp.eq.s32.totalorder %s11, 1
    %p137 = scmp.ne.s32.totalorder %s132, %s134
    %p138 = scmp.eq.s32.totalorder %s11, 0
    %p139 = por %p137, %p138
    %p140 = scmp.ne.s32.totalorder %s132, %s134
    %p141 = scmp.eq.s32.totalorder %s16, 1
    %p142 = por %p140, %p141
    %p143 = scmp.ne.s32.totalorder %s134, %s135
    %p144 = scmp.eq.s32.totalorder %s16, 0
    %p145 = por %p143, %p144
    %p146 = scmp.ne.s32.totalorder %s134, %s135
    %p147 = scmp.eq.s32.totalorder %s17, 1
    %p148 = por %p146, %p147
    %p150 = scmp.ne.s32.totalorder %s135, %s149
    %p151 = scmp.eq.s32.totalorder %s17, 0
    %p152 = por %p150, %p151
    %s153 = ssub.s32 %s18, %s30
    %s154 = ssub.s32 %s19, %s26
    %s155 = sor.u32 %s153, %s154
    %p156 = scmp.eq.s32.totalorder %s155, 0
    %s158 = sadd.s32 %s157, 1
    %s159 = scalar_select %p156, %s157, %s158
    %p162 = pneg %p156
    %p163 = scmp.eq.s32.totalorder %s11, 1
    %p164 = por %p162, %p163
    %p165 = scmp.ne.s32.totalorder %s157, %s160
    %p166 = scmp.eq.s32.totalorder %s11, 0
    %p167 = por %p165, %p166
    %p168 = scmp.ne.s32.totalorder %s157, %s160
    %p169 = scmp.eq.s32.totalorder %s16, 1
    %p170 = por %p168, %p169
    %p171 = scmp.ne.s32.totalorder %s160, %s161
    %p172 = scmp.eq.s32.totalorder %s16, 0
    %p173 = por %p171, %p172
    %p174 = scmp.ne.s32.totalorder %s160, %s161
    %p175 = scmp.eq.s32.totalorder %s17, 1
    %p176 = por %p174, %p175
    %p178 = scmp.ne.s32.totalorder %s161, %s177
    %p179 = scmp.eq.s32.totalorder %s17, 0
    %p180 = por %p178, %p179
    %p181 = scmp.le.s32.totalorder 1, %s11
    %p182 = scmp.lt.s32.totalorder %s11, 3
    %p183 = pnand %p181, %p182
    %p184 = pneg %p183
    // Predicated region
    $region9: #{transition_block_forward.1} parent=5 // pred_check
      _
    $region10: #{transition_block_forward.1} parent=5 // pred_check_branch
      %186 = sbr.rel (%p183) target = $region12
    $region11: #{transition_block_forward.1} parent=5 // pred_region
      %s187 = ssub.s32 %s11, 1
      // Predicated region
      $region13: #{transition_block_forward.1} parent=11 // pred_check
        %p188 = pneg %p124
      $region14: #{transition_block_forward.1} parent=11 // pred_check_branch
        %190 = sbr.rel (%p188) target = $region16
      $region15: #{transition_block_forward.1} parent=11 // pred_region
        _
      $region16: #{transition_block_forward.1} parent=11 // pred_fallthru
        _
      // Predicated region
      $region17: #{transition_block_forward.1} parent=11 // pred_check
        %p191 = pneg %p145
      $region18: #{transition_block_forward.1} parent=11 // pred_check_branch
        %193 = sbr.rel (%p191) target = $region20
      $region19: #{transition_block_forward.1} parent=11 // pred_region
        _
      $region20: #{transition_block_forward.1} parent=11 // pred_fallthru
        _
    $region12: #{transition_block_forward.1} parent=5 // pred_fallthru
      _
    %p194 = scmp.lt.s32.totalorder %s11, 2
    // Predicated region
    $region21: #{transition_block_forward.1} parent=5 // pred_check
      %p195 = pneg %p194
    $region22: #{transition_block_forward.1} parent=5 // pred_check_branch
      %197 = sbr.rel (%p195) target = $region24
    $region23: #{transition_block_forward.1} parent=5 // pred_region
      // Predicated region
      $region25: #{transition_block_forward.1} parent=23 // pred_check
        %p198 = pneg %p45
      $region26: #{transition_block_forward.1} parent=23 // pred_check_branch
        %200 = sbr.rel (%p198) target = $region28
      $region27: #{transition_block_forward.1} parent=23 // pred_region
        %s201 = smul.u32 2, %s19
        %p202 = scmp.lt.s32.totalorder %s18, 1
        %s203 = scalar_select %p202, %s18, 1
        %p204 = scmp.lt.s32.totalorder %s201, 1
        %s205 = scalar_select %p204, %s201, 1
        %s206 = smul.addr %s203, 16
        %s207 = sadd.s32 %s205, %s206
        %s208 = smul.addr %s207, 8
        %s209 = scalar_lea.vmem %s0, %s208
        %s210 = smul.u32 2, %s19
      $region28: #{transition_block_forward.1} parent=23 // pred_fallthru
        _
      // Predicated region
      $region29: #{transition_block_forward.1} parent=23 // pred_check
        %p211 = pneg %p71
      $region30: #{transition_block_forward.1} parent=23 // pred_check_branch
        %213 = sbr.rel (%p211) target = $region32
      $region31: #{transition_block_forward.1} parent=23 // pred_region
        %p214 = scmp.lt.s32.totalorder %s18, 1
        %s215 = scalar_select %p214, %s18, 1
        %s216 = smul.addr %s215, 8
        %s217 = smul.addr %s216, 8
        %s218 = scalar_lea.vmem %s1, %s217
      $region32: #{transition_block_forward.1} parent=23 // pred_fallthru
        _
      // Predicated region
      $region33: #{transition_block_forward.1} parent=23 // pred_check
        %p219 = pneg %p97
      $region34: #{transition_block_forward.1} parent=23 // pred_check_branch
        %221 = sbr.rel (%p219) target = $region36
      $region35: #{transition_block_forward.1} parent=23 // pred_region
        %p222 = scmp.lt.s32.totalorder %s18, 1
        %s223 = scalar_select %p222, %s18, 1
        %s224 = smul.addr %s223, 8
        %s225 = smul.addr %s224, 8
        %s226 = scalar_lea.vmem %s2, %s225
      $region36: #{transition_block_forward.1} parent=23 // pred_fallthru
        _
    $region24: #{transition_block_forward.1} parent=5 // pred_fallthru
      _
    %p227 = scmp.le.s32.totalorder 1, %s11
    %p228 = scmp.lt.s32.totalorder %s11, 3
    %p229 = pnand %p227, %p228
    %p230 = pneg %p229
    // Predicated region
    $region37: #{transition_block_forward.1} parent=5 // pred_check
      _
    $region38: #{transition_block_forward.1} parent=5 // pred_check_branch
      %232 = sbr.rel (%p229) target = $region40
    $region39: #{transition_block_forward.1} parent=5 // pred_region
      %s233 = ssub.s32 %s11, 1
      %s234 = smul.u32 2, %s21
      %p235 = scmp.lt.s32.totalorder %s20, 1
      %s236 = scalar_select %p235, %s20, 1
      %p237 = scmp.lt.s32.totalorder %s234, 1
      %s238 = scalar_select %p237, %s234, 1
      %s239 = smul.addr %s236, 16
      %s240 = sadd.s32 %s238, %s239
      %s241 = smul.addr %s240, 8
      %s242 = scalar_lea.vmem %s0, %s241
      %p243 = pneg %p51
      %p244 = pneg %p48
      %p245 = scmp.lt.s32.totalorder %s20, 1
      %s246 = scalar_select %p245, %s20, 1
      %s247 = smul.addr %s246, 8
      %s248 = smul.addr %s247, 8
      %s249 = scalar_lea.vmem %s1, %s248
      %p250 = pneg %p77
      %p251 = pneg %p74
      %p252 = scmp.lt.s32.totalorder %s20, 1
      %s253 = scalar_select %p252, %s20, 1
      %s254 = smul.addr %s253, 8
      %s255 = smul.addr %s254, 8
      %s256 = scalar_lea.vmem %s2, %s255
      %p257 = pneg %p103
      %p258 = pneg %p100
      %p259 = pneg %p124
      %p260 = pneg %p121
      %p261 = pneg %p145
      %p262 = pneg %p142
      %p263 = pneg %p173
      %p264 = pneg %p170
      %s265 = smul.u32 8, %s21
      %p266 = scmp.lt.s32.totalorder %s20, 1
      %s267 = scalar_select %p266, %s20, 1
      %p268 = scmp.lt.s32.totalorder %s265, 7
      %s269 = scalar_select %p268, %s265, 7
      %s270 = smul.addr %s267, 64
      %s271 = sadd.s32 %s269, %s270
      %s272 = smul.addr %s271, 4
      %s273 = scalar_lea.vmem %s5, %s272
      %s274 = smul.u32 2, %s21
      %p275 = scmp.lt.s32.totalorder %s20, 1
      %s276 = scalar_select %p275, %s20, 1
      %p277 = scmp.lt.s32.totalorder %s274, 1
      %s278 = scalar_select %p277, %s274, 1
      %s279 = smul.addr %s276, 16
      %s280 = sadd.s32 %s278, %s279
      %s281 = smul.addr %s280, 8
      %s282 = scalar_lea.vmem %s0, %s281
      %s283 = smul.u32 2, %s21
      %p284 = scmp.lt.s32.totalorder %s20, 1
      %s285 = scalar_select %p284, %s20, 1
      %s286 = smul.addr %s285, 8
      %s287 = smul.addr %s286, 8
      %s288 = scalar_lea.vmem %s1, %s287
      %p289 = scmp.lt.s32.totalorder %s20, 1
      %s290 = scalar_select %p289, %s20, 1
      %s291 = smul.addr %s290, 8
      %s292 = smul.addr %s291, 8
      %s293 = scalar_lea.vmem %s2, %s292
      %s294 = smul.u32 8, %s21
      %p295 = scmp.lt.s32.totalorder %s20, 1
      %s296 = scalar_select %p295, %s20, 1
      %p297 = scmp.lt.s32.totalorder %s294, 7
      %s298 = scalar_select %p297, %s294, 7
      %s299 = smul.addr %s296, 64
      %s300 = sadd.s32 %s298, %s299
      %s301 = smul.addr %s300, 4
      %s302 = scalar_lea.vmem %s5, %s301
      %s303 = smul.u32 8, %s21
      %v305 = vld [vmem:[%s282] sm:$0xff]
      %v306 = vld [vmem:[%s282 + $0x8] sm:$0xff]
      %v307 = vld [vmem:[%s282 + $0x10] sm:$0xff]
      %v308 = vld [vmem:[%s282 + $0x18] sm:$0xff]
      %v309 = vld [vmem:[%s282 + $0x20] sm:$0xff]
      %v310 = vld [vmem:[%s282 + $0x28] sm:$0xff]
      %v311 = vld [vmem:[%s282 + $0x30] sm:$0xff]
      %v312 = vld [vmem:[%s282 + $0x38] sm:$0xff]
      %v313 = vld [vmem:[%s282 + $0x40] sm:$0xff]
      %v314 = vld [vmem:[%s282 + $0x48] sm:$0xff]
      %v315 = vld [vmem:[%s282 + $0x50] sm:$0xff]
      %v316 = vld [vmem:[%s282 + $0x58] sm:$0xff]
      %v317 = vld [vmem:[%s282 + $0x60] sm:$0xff]
      %v318 = vld [vmem:[%s282 + $0x68] sm:$0xff]
      %v319 = vld [vmem:[%s282 + $0x70] sm:$0xff]
      %v320 = vld [vmem:[%s282 + $0x78] sm:$0xff]
      %v321 = vld [vmem:[%s288] sm:$0xff]
      %v322 = vld [vmem:[%s288 + $0x8] sm:$0xff]
      %v323 = vld [vmem:[%s288 + $0x10] sm:$0xff]
      %v324 = vld [vmem:[%s288 + $0x18] sm:$0xff]
      %v325 = vld [vmem:[%s288 + $0x20] sm:$0xff]
      %v326 = vld [vmem:[%s288 + $0x28] sm:$0xff]
      %v327 = vld [vmem:[%s288 + $0x30] sm:$0xff]
      %v328 = vld [vmem:[%s288 + $0x38] sm:$0xff]
      %330 = vset.pattern.permute.xlu0 0
      %331 = vperm.xlu0 %330, %v321
      %v332 = vpop.permute.xlu0 %331
      %335 = vset.pattern.permute.xlu0 0
      %336 = vperm.xlu0 %335, %v322
      %v337 = vpop.permute.xlu0 %336
      %340 = vset.pattern.permute.xlu0 0
      %341 = vperm.xlu0 %340, %v323
      %v342 = vpop.permute.xlu0 %341
      %345 = vset.pattern.permute.xlu0 0
      %346 = vperm.xlu0 %345, %v324
      %v347 = vpop.permute.xlu0 %346
      %350 = vset.pattern.permute.xlu0 0
      %351 = vperm.xlu0 %350, %v325
      %v352 = vpop.permute.xlu0 %351
      %355 = vset.pattern.permute.xlu0 0
      %356 = vperm.xlu0 %355, %v326
      %v357 = vpop.permute.xlu0 %356
      %360 = vset.pattern.permute.xlu0 0
      %361 = vperm.xlu0 %360, %v327
      %v362 = vpop.permute.xlu0 %361
      %365 = vset.pattern.permute.xlu0 0
      %366 = vperm.xlu0 %365, %v328
      %v367 = vpop.permute.xlu0 %366
      %v369 = vmul.f32 %v305, %v332
      %v370 = vmul.f32 %v306, %v332
      %v371 = vmul.f32 %v307, %v337
      %v372 = vmul.f32 %v308, %v337
      %v373 = vmul.f32 %v309, %v342
      %v374 = vmul.f32 %v310, %v342
      %v375 = vmul.f32 %v311, %v347
      %v376 = vmul.f32 %v312, %v347
      %v377 = vmul.f32 %v313, %v352
      %v378 = vmul.f32 %v314, %v352
      %v379 = vmul.f32 %v315, %v357
      %v380 = vmul.f32 %v316, %v357
      %v381 = vmul.f32 %v317, %v362
      %v382 = vmul.f32 %v318, %v362
      %v383 = vmul.f32 %v319, %v367
      %v384 = vmul.f32 %v320, %v367
      %v385 = vld [vmem:[%s293] sm:$0xff]
      %v386 = vld [vmem:[%s293 + $0x8] sm:$0xff]
      %v387 = vld [vmem:[%s293 + $0x10] sm:$0xff]
      %v388 = vld [vmem:[%s293 + $0x18] sm:$0xff]
      %v389 = vld [vmem:[%s293 + $0x20] sm:$0xff]
      %v390 = vld [vmem:[%s293 + $0x28] sm:$0xff]
      %v391 = vld [vmem:[%s293 + $0x30] sm:$0xff]
      %v392 = vld [vmem:[%s293 + $0x38] sm:$0xff]
      %394 = vset.pattern.permute.xlu0 0
      %395 = vperm.xlu0 %394, %v385
      %v396 = vpop.permute.xlu0 %395
      %399 = vset.pattern.permute.xlu0 0
      %400 = vperm.xlu0 %399, %v386
      %v401 = vpop.permute.xlu0 %400
      %404 = vset.pattern.permute.xlu0 0
      %405 = vperm.xlu0 %404, %v387
      %v406 = vpop.permute.xlu0 %405
      %409 = vset.pattern.permute.xlu0 0
      %410 = vperm.xlu0 %409, %v388
      %v411 = vpop.permute.xlu0 %410
      %414 = vset.pattern.permute.xlu0 0
      %415 = vperm.xlu0 %414, %v389
      %v416 = vpop.permute.xlu0 %415
      %419 = vset.pattern.permute.xlu0 0
      %420 = vperm.xlu0 %419, %v390
      %v421 = vpop.permute.xlu0 %420
      %424 = vset.pattern.permute.xlu0 0
      %425 = vperm.xlu0 %424, %v391
      %v426 = vpop.permute.xlu0 %425
      %429 = vset.pattern.permute.xlu0 0
      %430 = vperm.xlu0 %429, %v392
      %v431 = vpop.permute.xlu0 %430
      %v433 = vadd.f32 %v369, %v396
      %v434 = vadd.f32 %v370, %v396
      %v435 = vadd.f32 %v371, %v401
      %v436 = vadd.f32 %v372, %v401
      %v437 = vadd.f32 %v373, %v406
      %v438 = vadd.f32 %v374, %v406
      %v439 = vadd.f32 %v375, %v411
      %v440 = vadd.f32 %v376, %v411
      %v441 = vadd.f32 %v377, %v416
      %v442 = vadd.f32 %v378, %v416
      %v443 = vadd.f32 %v379, %v421
      %v444 = vadd.f32 %v380, %v421
      %v445 = vadd.f32 %v381, %v426
      %v446 = vadd.f32 %v382, %v426
      %v447 = vadd.f32 %v383, %v431
      %v448 = vadd.f32 %v384, %v431
      %v449 = vmax.f32 %v433, 0.0
      %v450 = vmax.f32 %v434, 0.0
      %v451 = vmax.f32 %v435, 0.0
      %v452 = vmax.f32 %v436, 0.0
      %v453 = vmax.f32 %v437, 0.0
      %v454 = vmax.f32 %v438, 0.0
      %v455 = vmax.f32 %v439, 0.0
      %v456 = vmax.f32 %v440, 0.0
      %v457 = vmax.f32 %v441, 0.0
      %v458 = vmax.f32 %v442, 0.0
      %v459 = vmax.f32 %v443, 0.0
      %v460 = vmax.f32 %v444, 0.0
      %v461 = vmax.f32 %v445, 0.0
      %v462 = vmax.f32 %v446, 0.0
      %v463 = vmax.f32 %v447, 0.0
      %v464 = vmax.f32 %v448, 0.0
      %v465 = vpack.c.bf16 %v451, %v449
      %v466 = vpack.c.bf16 %v452, %v450
      %v467 = vpack.c.bf16 %v455, %v453
      %v468 = vpack.c.bf16 %v456, %v454
      %v469 = vpack.c.bf16 %v459, %v457
      %v470 = vpack.c.bf16 %v460, %v458
      %v471 = vpack.c.bf16 %v463, %v461
      %v472 = vpack.c.bf16 %v464, %v462
      %v473 = vld [vmem:[%s3] sm:$0xf]
      %v474 = vld [vmem:[%s3 + $0x4] sm:$0xf]
      %v475 = vld [vmem:[%s3 + $0x8] sm:$0xf]
      %v476 = vld [vmem:[%s3 + $0xc] sm:$0xf]
      %v477 = vld [vmem:[%s3 + $0x10] sm:$0xf]
      %v478 = vld [vmem:[%s3 + $0x14] sm:$0xf]
      %v479 = vld [vmem:[%s3 + $0x18] sm:$0xf]
      %v480 = vld [vmem:[%s3 + $0x1c] sm:$0xf]
      %v489 = vunpack.c.l.b16 %v473
      %v490 = vunpack.c.l.b16 %v474
      %v491 = vunpack.c.l.b16 %v475
      %v492 = vunpack.c.l.b16 %v476
      %v493 = vunpack.c.l.b16 %v477
      %v494 = vunpack.c.l.b16 %v478
      %v495 = vunpack.c.l.b16 %v479
      %v496 = vunpack.c.l.b16 %v480
      %v497 = vpack.c.b16 %v490, %v489
      %v498 = vpack.c.b16 %v492, %v491
      %v499 = vpack.c.b16 %v494, %v493
      %v500 = vpack.c.b16 %v496, %v495
      %vm501 = vcmask 523264
      %v503 = vsel %vm501, %v497, 0
      %v506 = vsel %vm501, %v498, 0
      %v509 = vsel %vm501, %v499, 0
      %v512 = vsel %vm501, %v500, 0
      %514 = vmatprep.subr.bf16.mxu0 0
      %515 = vmatpush1.bf16.msra.mxu0 0
      %516 = vmatprep.subr.bf16.mxu0 0
      %517 = vmatpush1.bf16.msra.mxu0 0
      %518 = vmatprep.subr.bf16.mxu0 0
      %519 = vmatpush1.bf16.msra.mxu0 0
      %520 = vmatprep.subr.bf16.mxu0 0
      %521 = vmatpush1.bf16.msra.mxu0 0
      %522 = vmatprep.subr.bf16.mxu0 %v472
      %523 = vmatpush1.bf16.msra.mxu0 %v471
      %524 = vmatprep.subr.bf16.mxu0 %v470
      %525 = vmatpush1.bf16.msra.mxu0 %v469
      %526 = vmatprep.subr.bf16.mxu0 %v468
      %527 = vmatpush1.bf16.msra.mxu0 %v467
      %528 = vmatprep.subr.bf16.mxu0 %v466
      %529 = vmatpush1.bf16.msra.mxu0 %v465
      %530 = vmatprep.subr.bf16.mxu0 0
      %531 = vmatpush2.bf16.msra.mxu0 0
      %532 = vmatprep.subr.bf16.mxu0 0
      %533 = vmatpush2.bf16.msra.mxu0 0
      %534 = vmatprep.subr.bf16.mxu0 0
      %535 = vmatpush2.bf16.msra.mxu0 0
      %536 = vmatprep.subr.bf16.mxu0 0
      %537 = vmatpush2.bf16.msra.mxu0 0
      %538 = vmatprep.subr.bf16.mxu0 0
      %539 = vmatpush2.bf16.msra.mxu0 0
      %540 = vmatprep.subr.bf16.mxu0 0
      %541 = vmatpush2.bf16.msra.mxu0 0
      %542 = vmatprep.subr.bf16.mxu0 0
      %543 = vmatpush2.bf16.msra.mxu0 0
      %544 = vmatprep.subr.bf16.mxu0 0
      %545 = vmatpush2.bf16.msra.mxu0 0
      %546 = vmatprep.mubr.bf16.mxu0 0
      %547 = vmatmul.mubr.bf16.gmra.mxu0 %v503
      %v548 = vpop.f32.mrf.mxu0
      %v549 = vadd.f32 0.0, %v548
      %v550 = vpop.f32.mrf.mxu0
      %v551 = vadd.f32 0.0, %v550
      %v552 = vpop.f32.mrf.mxu0
      %v553 = vadd.f32 0.0, %v552
      %v554 = vpop.f32.mrf.mxu0
      %v555 = vadd.f32 0.0, %v554
      %556 = vmatprep.mubr.bf16.mxu0 0
      %557 = vmatmul.mubr.bf16.gmra.mxu0 %v506
      %v558 = vpop.f32.mrf.mxu0
      %v559 = vadd.f32 0.0, %v558
      %v560 = vpop.f32.mrf.mxu0
      %v561 = vadd.f32 0.0, %v560
      %v562 = vpop.f32.mrf.mxu0
      %v563 = vadd.f32 0.0, %v562
      %v564 = vpop.f32.mrf.mxu0
      %v565 = vadd.f32 0.0, %v564
      %566 = vmatprep.mubr.bf16.mxu0 0
      %567 = vmatmul.mubr.bf16.gmra.mxu0 %v509
      %v568 = vpop.f32.mrf.mxu0
      %v569 = vadd.f32 0.0, %v568
      %v570 = vpop.f32.mrf.mxu0
      %v571 = vadd.f32 0.0, %v570
      %v572 = vpop.f32.mrf.mxu0
      %v573 = vadd.f32 0.0, %v572
      %v574 = vpop.f32.mrf.mxu0
      %v575 = vadd.f32 0.0, %v574
      %576 = vmatprep.mubr.bf16.mxu0 0
      %577 = vmatmul.mubr.bf16.gmra.mxu0 %v512
      %v578 = vpop.f32.mrf.mxu0
      %v579 = vadd.f32 0.0, %v578
      %v580 = vpop.f32.mrf.mxu0
      %v581 = vadd.f32 0.0, %v580
      %v582 = vpop.f32.mrf.mxu0
      %v583 = vadd.f32 0.0, %v582
      %v584 = vpop.f32.mrf.mxu0
      %v585 = vadd.f32 0.0, %v584
      %586 = vdwg.mxu0
      %v587 = vpack.c.bf16 %v553, %v549
      %v588 = vpack.c.bf16 %v555, %v551
      %v589 = vpack.c.bf16 %v563, %v559
      %v590 = vpack.c.bf16 %v565, %v561
      %v591 = vpack.c.bf16 %v573, %v569
      %v592 = vpack.c.bf16 %v575, %v571
      %v593 = vpack.c.bf16 %v583, %v579
      %v594 = vpack.c.bf16 %v585, %v581
      %v595 = vld [vmem:[%s4] sm:$0xf]
      %v596 = vld [vmem:[%s4 + $0x4] sm:$0xf]
      %v599 = vunpack.c.l.b16 %v595
      %v600 = vunpack.c.l.b16 %v596
      %v601 = vpack.c.b16 %v600, %v599
      %vm603 = vcmask 130048
      %v605 = vsel %vm603, %v587, 0
      %v608 = vsel %vm603, %v589, 0
      %v611 = vsel %vm603, %v591, 0
      %v614 = vsel %vm603, %v593, 0
      %616 = vmatprep.subr.bf16.mxu0 0
      %617 = vmatpush1.bf16.msra.mxu0 0
      %618 = vmatprep.subr.bf16.mxu0 0
      %619 = vmatpush1.bf16.msra.mxu0 0
      %620 = vmatprep.subr.bf16.mxu0 0
      %621 = vmatpush1.bf16.msra.mxu0 0
      %622 = vmatprep.subr.bf16.mxu0 0
      %623 = vmatpush1.bf16.msra.mxu0 0
      %624 = vmatprep.subr.bf16.mxu0 0
      %625 = vmatpush1.bf16.msra.mxu0 0
      %626 = vmatprep.subr.bf16.mxu0 0
      %627 = vmatpush1.bf16.msra.mxu0 0
      %628 = vmatprep.subr.bf16.mxu0 0
      %629 = vmatpush1.bf16.msra.mxu0 0
      %630 = vmatprep.subr.bf16.mxu0 0
      %631 = vmatpush1.bf16.msra.mxu0 %v601
      %632 = vmatprep.subr.bf16.mxu0 0
      %633 = vmatpush2.bf16.msra.mxu0 0
      %634 = vmatprep.subr.bf16.mxu0 0
      %635 = vmatpush2.bf16.msra.mxu0 0
      %636 = vmatprep.subr.bf16.mxu0 0
      %637 = vmatpush2.bf16.msra.mxu0 0
      %638 = vmatprep.subr.bf16.mxu0 0
      %639 = vmatpush2.bf16.msra.mxu0 0
      %640 = vmatprep.subr.bf16.mxu0 0
      %641 = vmatpush2.bf16.msra.mxu0 0
      %642 = vmatprep.subr.bf16.mxu0 0
      %643 = vmatpush2.bf16.msra.mxu0 0
      %644 = vmatprep.subr.bf16.mxu0 0
      %645 = vmatpush2.bf16.msra.mxu0 0
      %646 = vmatprep.subr.bf16.mxu0 0
      %647 = vmatpush2.bf16.msra.mxu0 0
      %648 = vmatprep.mubr.bf16.mxu0 0
      %649 = vmatmul.mubr.bf16.gmra.mxu0 %v605
      %v650 = vpop.f32.mrf.mxu0
      %v651 = vadd.f32 0.0, %v650
      %v652 = vpop.f32.mrf.mxu0
      %v653 = vpop.f32.mrf.mxu0
      %v654 = vadd.f32 0.0, %v653
      %v655 = vpop.f32.mrf.mxu0
      %656 = vmatprep.mubr.bf16.mxu0 0
      %657 = vmatmul.mubr.bf16.gmra.mxu0 %v608
      %v658 = vpop.f32.mrf.mxu0
      %v659 = vadd.f32 0.0, %v658
      %v660 = vpop.f32.mrf.mxu0
      %v661 = vpop.f32.mrf.mxu0
      %v662 = vadd.f32 0.0, %v661
      %v663 = vpop.f32.mrf.mxu0
      %664 = vmatprep.mubr.bf16.mxu0 0
      %665 = vmatmul.mubr.bf16.gmra.mxu0 %v611
      %v666 = vpop.f32.mrf.mxu0
      %v667 = vadd.f32 0.0, %v666
      %v668 = vpop.f32.mrf.mxu0
      %v669 = vpop.f32.mrf.mxu0
      %v670 = vadd.f32 0.0, %v669
      %v671 = vpop.f32.mrf.mxu0
      %672 = vmatprep.mubr.bf16.mxu0 0
      %673 = vmatmul.mubr.bf16.gmra.mxu0 %v614
      %v674 = vpop.f32.mrf.mxu0
      %v675 = vadd.f32 0.0, %v674
      %v676 = vpop.f32.mrf.mxu0
      %v677 = vpop.f32.mrf.mxu0
      %v678 = vadd.f32 0.0, %v677
      %v679 = vpop.f32.mrf.mxu0
      %680 = vdwg.mxu0
      %v681 = vpack.c.bf16 %v654, %v651
      %v682 = vpack.c.bf16 %v662, %v659
      %v683 = vpack.c.bf16 %v670, %v667
      %v684 = vpack.c.bf16 %v678, %v675
      %v689 = vunpack.c.l.b16 %v681
      %v690 = vunpack.c.h.b16 %v681
      %v691 = vunpack.c.l.b16 %v682
      %v692 = vunpack.c.h.b16 %v682
      %v693 = vunpack.c.l.b16 %v683
      %v694 = vunpack.c.h.b16 %v683
      %v695 = vunpack.c.l.b16 %v684
      %v696 = vunpack.c.h.b16 %v684
      %v697 = vpack.c.b16 %v689, %v689
      %v698 = vpack.c.b16 %v690, %v690
      %v699 = vpack.c.b16 %v691, %v691
      %v700 = vpack.c.b16 %v692, %v692
      %v701 = vpack.c.b16 %v693, %v693
      %v702 = vpack.c.b16 %v694, %v694
      %v703 = vpack.c.b16 %v695, %v695
      %v704 = vpack.c.b16 %v696, %v696
      %vm713 = vcmask 519168
      %714 = vst.msk [vmem:[%s302] sm:$0xf] %vm713, %v697
      %715 = vst.msk [vmem:[%s302 + $0x20] sm:$0xf] %vm713, %v698
      %716 = vst.msk [vmem:[%s302 + $0x40] sm:$0xf] %vm713, %v699
      %717 = vst.msk [vmem:[%s302 + $0x60] sm:$0xf] %vm713, %v700
      %718 = vst.msk [vmem:[%s302 + $0x80] sm:$0xf] %vm713, %v701
      %719 = vst.msk [vmem:[%s302 + $0xa0] sm:$0xf] %vm713, %v702
      %720 = vst.msk [vmem:[%s302 + $0xc0] sm:$0xf] %vm713, %v703
      %721 = vst.msk [vmem:[%s302 + $0xe0] sm:$0xf] %vm713, %v704
      %726 = vrot.lane.b32.xlu0 %v587, 112
      %v727 = vpop.permute.xlu0 %726
      %728 = vrot.lane.b32.xlu0 %v589, 112
      %v729 = vpop.permute.xlu0 %728
      %730 = vrot.lane.b32.xlu0 %v591, 112
      %v731 = vpop.permute.xlu0 %730
      %732 = vrot.lane.b32.xlu0 %v593, 112
      %v733 = vpop.permute.xlu0 %732
      %v735 = vsel %vm603, %v727, 0
      %v738 = vsel %vm603, %v729, 0
      %v741 = vsel %vm603, %v731, 0
      %v744 = vsel %vm603, %v733, 0
      %746 = vmatprep.subr.bf16.mxu0 0
      %747 = vmatpush1.bf16.msra.mxu0 0
      %748 = vmatprep.subr.bf16.mxu0 0
      %749 = vmatpush1.bf16.msra.mxu0 0
      %750 = vmatprep.subr.bf16.mxu0 0
      %751 = vmatpush1.bf16.msra.mxu0 0
      %752 = vmatprep.subr.bf16.mxu0 0
      %753 = vmatpush1.bf16.msra.mxu0 0
      %754 = vmatprep.subr.bf16.mxu0 0
      %755 = vmatpush1.bf16.msra.mxu0 0
      %756 = vmatprep.subr.bf16.mxu0 0
      %757 = vmatpush1.bf16.msra.mxu0 0
      %758 = vmatprep.subr.bf16.mxu0 0
      %759 = vmatpush1.bf16.msra.mxu0 0
      %760 = vmatprep.subr.bf16.mxu0 0
      %761 = vmatpush1.bf16.msra.mxu0 %v601
      %762 = vmatprep.subr.bf16.mxu0 0
      %763 = vmatpush2.bf16.msra.mxu0 0
      %764 = vmatprep.subr.bf16.mxu0 0
      %765 = vmatpush2.bf16.msra.mxu0 0
      %766 = vmatprep.subr.bf16.mxu0 0
      %767 = vmatpush2.bf16.msra.mxu0 0
      %768 = vmatprep.subr.bf16.mxu0 0
      %769 = vmatpush2.bf16.msra.mxu0 0
      %770 = vmatprep.subr.bf16.mxu0 0
      %771 = vmatpush2.bf16.msra.mxu0 0
      %772 = vmatprep.subr.bf16.mxu0 0
      %773 = vmatpush2.bf16.msra.mxu0 0
      %774 = vmatprep.subr.bf16.mxu0 0
      %775 = vmatpush2.bf16.msra.mxu0 0
      %776 = vmatprep.subr.bf16.mxu0 0
      %777 = vmatpush2.bf16.msra.mxu0 0
      %778 = vmatprep.mubr.bf16.mxu0 0
      %779 = vmatmul.mubr.bf16.gmra.mxu0 %v735
      %v780 = vpop.f32.mrf.mxu0
      %v781 = vadd.f32 0.0, %v780
      %v782 = vpop.f32.mrf.mxu0
      %v783 = vpop.f32.mrf.mxu0
      %v784 = vadd.f32 0.0, %v783
      %v785 = vpop.f32.mrf.mxu0
      %786 = vmatprep.mubr.bf16.mxu0 0
      %787 = vmatmul.mubr.bf16.gmra.mxu0 %v738
      %v788 = vpop.f32.mrf.mxu0
      %v789 = vadd.f32 0.0, %v788
      %v790 = vpop.f32.mrf.mxu0
      %v791 = vpop.f32.mrf.mxu0
      %v792 = vadd.f32 0.0, %v791
      %v793 = vpop.f32.mrf.mxu0
      %794 = vmatprep.mubr.bf16.mxu0 0
      %795 = vmatmul.mubr.bf16.gmra.mxu0 %v741
      %v796 = vpop.f32.mrf.mxu0
      %v797 = vadd.f32 0.0, %v796
      %v798 = vpop.f32.mrf.mxu0
      %v799 = vpop.f32.mrf.mxu0
      %v800 = vadd.f32 0.0, %v799
      %v801 = vpop.f32.mrf.mxu0
      %802 = vmatprep.mubr.bf16.mxu0 0
      %803 = vmatmul.mubr.bf16.gmra.mxu0 %v744
      %v804 = vpop.f32.mrf.mxu0
      %v805 = vadd.f32 0.0, %v804
      %v806 = vpop.f32.mrf.mxu0
      %v807 = vpop.f32.mrf.mxu0
      %v808 = vadd.f32 0.0, %v807
      %v809 = vpop.f32.mrf.mxu0
      %810 = vdwg.mxu0
      %v811 = vpack.c.bf16 %v784, %v781
      %v812 = vpack.c.bf16 %v792, %v789
      %v813 = vpack.c.bf16 %v800, %v797
      %v814 = vpack.c.bf16 %v808, %v805
      %v819 = vunpack.c.l.b16 %v811
      %v820 = vunpack.c.h.b16 %v811
      %v821 = vunpack.c.l.b16 %v812
      %v822 = vunpack.c.h.b16 %v812
      %v823 = vunpack.c.l.b16 %v813
      %v824 = vunpack.c.h.b16 %v813
      %v825 = vunpack.c.l.b16 %v814
      %v826 = vunpack.c.h.b16 %v814
      %v827 = vpack.c.b16 %v819, %v819
      %v828 = vpack.c.b16 %v820, %v820
      %v829 = vpack.c.b16 %v821, %v821
      %v830 = vpack.c.b16 %v822, %v822
      %v831 = vpack.c.b16 %v823, %v823
      %v832 = vpack.c.b16 %v824, %v824
      %v833 = vpack.c.b16 %v825, %v825
      %v834 = vpack.c.b16 %v826, %v826
      %835 = vrot.lane.b32.xlu0 %v827, 64
      %v836 = vpop.permute.xlu0 %835
      %837 = vrot.lane.b32.xlu0 %v828, 64
      %v838 = vpop.permute.xlu0 %837
      %839 = vrot.lane.b32.xlu0 %v829, 64
      %v840 = vpop.permute.xlu0 %839
      %841 = vrot.lane.b32.xlu0 %v830, 64
      %v842 = vpop.permute.xlu0 %841
      %843 = vrot.lane.b32.xlu0 %v831, 64
      %v844 = vpop.permute.xlu0 %843
      %845 = vrot.lane.b32.xlu0 %v832, 64
      %v846 = vpop.permute.xlu0 %845
      %847 = vrot.lane.b32.xlu0 %v833, 64
      %v848 = vpop.permute.xlu0 %847
      %849 = vrot.lane.b32.xlu0 %v834, 64
      %v850 = vpop.permute.xlu0 %849
      %vm859 = vcmask 1043968
      %860 = vst.msk [vmem:[%s302] sm:$0xf] %vm859, %v836
      %861 = vst.msk [vmem:[%s302 + $0x20] sm:$0xf] %vm859, %v838
      %862 = vst.msk [vmem:[%s302 + $0x40] sm:$0xf] %vm859, %v840
      %863 = vst.msk [vmem:[%s302 + $0x60] sm:$0xf] %vm859, %v842
      %864 = vst.msk [vmem:[%s302 + $0x80] sm:$0xf] %vm859, %v844
      %865 = vst.msk [vmem:[%s302 + $0xa0] sm:$0xf] %vm859, %v846
      %866 = vst.msk [vmem:[%s302 + $0xc0] sm:$0xf] %vm859, %v848
      %867 = vst.msk [vmem:[%s302 + $0xe0] sm:$0xf] %vm859, %v850
      %868 = vrot.lane.b32.xlu0 %v587, 96
      %v869 = vpop.permute.xlu0 %868
      %870 = vrot.lane.b32.xlu0 %v589, 96
      %v871 = vpop.permute.xlu0 %870
      %872 = vrot.lane.b32.xlu0 %v591, 96
      %v873 = vpop.permute.xlu0 %872
      %874 = vrot.lane.b32.xlu0 %v593, 96
      %v875 = vpop.permute.xlu0 %874
      %v877 = vsel %vm603, %v869, 0
      %v880 = vsel %vm603, %v871, 0
      %v883 = vsel %vm603, %v873, 0
      %v886 = vsel %vm603, %v875, 0
      %888 = vmatprep.subr.bf16.mxu0 0
      %889 = vmatpush1.bf16.msra.mxu0 0
      %890 = vmatprep.subr.bf16.mxu0 0
      %891 = vmatpush1.bf16.msra.mxu0 0
      %892 = vmatprep.subr.bf16.mxu0 0
      %893 = vmatpush1.bf16.msra.mxu0 0
      %894 = vmatprep.subr.bf16.mxu0 0
      %895 = vmatpush1.bf16.msra.mxu0 0
      %896 = vmatprep.subr.bf16.mxu0 0
      %897 = vmatpush1.bf16.msra.mxu0 0
      %898 = vmatprep.subr.bf16.mxu0 0
      %899 = vmatpush1.bf16.msra.mxu0 0
      %900 = vmatprep.subr.bf16.mxu0 0
      %901 = vmatpush1.bf16.msra.mxu0 0
      %902 = vmatprep.subr.bf16.mxu0 0
      %903 = vmatpush1.bf16.msra.mxu0 %v601
      %904 = vmatprep.subr.bf16.mxu0 0
      %905 = vmatpush2.bf16.msra.mxu0 0
      %906 = vmatprep.subr.bf16.mxu0 0
      %907 = vmatpush2.bf16.msra.mxu0 0
      %908 = vmatprep.subr.bf16.mxu0 0
      %909 = vmatpush2.bf16.msra.mxu0 0
      %910 = vmatprep.subr.bf16.mxu0 0
      %911 = vmatpush2.bf16.msra.mxu0 0
      %912 = vmatprep.subr.bf16.mxu0 0
      %913 = vmatpush2.bf16.msra.mxu0 0
      %914 = vmatprep.subr.bf16.mxu0 0
      %915 = vmatpush2.bf16.msra.mxu0 0
      %916 = vmatprep.subr.bf16.mxu0 0
      %917 = vmatpush2.bf16.msra.mxu0 0
      %918 = vmatprep.subr.bf16.mxu0 0
      %919 = vmatpush2.bf16.msra.mxu0 0
      %920 = vmatprep.mubr.bf16.mxu0 0
      %921 = vmatmul.mubr.bf16.gmra.mxu0 %v877
      %v922 = vpop.f32.mrf.mxu0
      %v923 = vadd.f32 0.0, %v922
      %v924 = vpop.f32.mrf.mxu0
      %v925 = vpop.f32.mrf.mxu0
      %v926 = vadd.f32 0.0, %v925
      %v927 = vpop.f32.mrf.mxu0
      %928 = vmatprep.mubr.bf16.mxu0 0
      %929 = vmatmul.mubr.bf16.gmra.mxu0 %v880
      %v930 = vpop.f32.mrf.mxu0
      %v931 = vadd.f32 0.0, %v930
      %v932 = vpop.f32.mrf.mxu0
      %v933 = vpop.f32.mrf.mxu0
      %v934 = vadd.f32 0.0, %v933
      %v935 = vpop.f32.mrf.mxu0
      %936 = vmatprep.mubr.bf16.mxu0 0
      %937 = vmatmul.mubr.bf16.gmra.mxu0 %v883
      %v938 = vpop.f32.mrf.mxu0
      %v939 = vadd.f32 0.0, %v938
      %v940 = vpop.f32.mrf.mxu0
      %v941 = vpop.f32.mrf.mxu0
      %v942 = vadd.f32 0.0, %v941
      %v943 = vpop.f32.mrf.mxu0
      %944 = vmatprep.mubr.bf16.mxu0 0
      %945 = vmatmul.mubr.bf16.gmra.mxu0 %v886
      %v946 = vpop.f32.mrf.mxu0
      %v947 = vadd.f32 0.0, %v946
      %v948 = vpop.f32.mrf.mxu0
      %v949 = vpop.f32.mrf.mxu0
      %v950 = vadd.f32 0.0, %v949
      %v951 = vpop.f32.mrf.mxu0
      %952 = vdwg.mxu0
      %v953 = vpack.c.bf16 %v926, %v923
      %v954 = vpack.c.bf16 %v934, %v931
      %v955 = vpack.c.bf16 %v942, %v939
      %v956 = vpack.c.bf16 %v950, %v947
      %v961 = vunpack.c.l.b16 %v953
      %v962 = vunpack.c.h.b16 %v953
      %v963 = vunpack.c.l.b16 %v954
      %v964 = vunpack.c.h.b16 %v954
      %v965 = vunpack.c.l.b16 %v955
      %v966 = vunpack.c.h.b16 %v955
      %v967 = vunpack.c.l.b16 %v956
      %v968 = vunpack.c.h.b16 %v956
      %v969 = vpack.c.b16 %v961, %v961
      %v970 = vpack.c.b16 %v962, %v962
      %v971 = vpack.c.b16 %v963, %v963
      %v972 = vpack.c.b16 %v964, %v964
      %v973 = vpack.c.b16 %v965, %v965
      %v974 = vpack.c.b16 %v966, %v966
      %v975 = vpack.c.b16 %v967, %v967
      %v976 = vpack.c.b16 %v968, %v968
      %985 = vst.msk [vmem:[%s302 + $0x4] sm:$0xf] %vm713, %v969
      %986 = vst.msk [vmem:[%s302 + $0x24] sm:$0xf] %vm713, %v970
      %987 = vst.msk [vmem:[%s302 + $0x44] sm:$0xf] %vm713, %v971
      %988 = vst.msk [vmem:[%s302 + $0x64] sm:$0xf] %vm713, %v972
      %989 = vst.msk [vmem:[%s302 + $0x84] sm:$0xf] %vm713, %v973
      %990 = vst.msk [vmem:[%s302 + $0xa4] sm:$0xf] %vm713, %v974
      %991 = vst.msk [vmem:[%s302 + $0xc4] sm:$0xf] %vm713, %v975
      %992 = vst.msk [vmem:[%s302 + $0xe4] sm:$0xf] %vm713, %v976
      %993 = vrot.lane.b32.xlu0 %v587, 80
      %v994 = vpop.permute.xlu0 %993
      %995 = vrot.lane.b32.xlu0 %v589, 80
      %v996 = vpop.permute.xlu0 %995
      %997 = vrot.lane.b32.xlu0 %v591, 80
      %v998 = vpop.permute.xlu0 %997
      %999 = vrot.lane.b32.xlu0 %v593, 80
      %v1000 = vpop.permute.xlu0 %999
      %v1002 = vsel %vm603, %v994, 0
      %v1005 = vsel %vm603, %v996, 0
      %v1008 = vsel %vm603, %v998, 0
      %v1011 = vsel %vm603, %v1000, 0
      %1013 = vmatprep.subr.bf16.mxu0 0
      %1014 = vmatpush1.bf16.msra.mxu0 0
      %1015 = vmatprep.subr.bf16.mxu0 0
      %1016 = vmatpush1.bf16.msra.mxu0 0
      %1017 = vmatprep.subr.bf16.mxu0 0
      %1018 = vmatpush1.bf16.msra.mxu0 0
      %1019 = vmatprep.subr.bf16.mxu0 0
      %1020 = vmatpush1.bf16.msra.mxu0 0
      %1021 = vmatprep.subr.bf16.mxu0 0
      %1022 = vmatpush1.bf16.msra.mxu0 0
      %1023 = vmatprep.subr.bf16.mxu0 0
      %1024 = vmatpush1.bf16.msra.mxu0 0
      %1025 = vmatprep.subr.bf16.mxu0 0
      %1026 = vmatpush1.bf16.msra.mxu0 0
      %1027 = vmatprep.subr.bf16.mxu0 0
      %1028 = vmatpush1.bf16.msra.mxu0 %v601
      %1029 = vmatprep.subr.bf16.mxu0 0
      %1030 = vmatpush2.bf16.msra.mxu0 0
      %1031 = vmatprep.subr.bf16.mxu0 0
      %1032 = vmatpush2.bf16.msra.mxu0 0
      %1033 = vmatprep.subr.bf16.mxu0 0
      %1034 = vmatpush2.bf16.msra.mxu0 0
      %1035 = vmatprep.subr.bf16.mxu0 0
      %1036 = vmatpush2.bf16.msra.mxu0 0
      %1037 = vmatprep.subr.bf16.mxu0 0
      %1038 = vmatpush2.bf16.msra.mxu0 0
      %1039 = vmatprep.subr.bf16.mxu0 0
      %1040 = vmatpush2.bf16.msra.mxu0 0
      %1041 = vmatprep.subr.bf16.mxu0 0
      %1042 = vmatpush2.bf16.msra.mxu0 0
      %1043 = vmatprep.subr.bf16.mxu0 0
      %1044 = vmatpush2.bf16.msra.mxu0 0
      %1045 = vmatprep.mubr.bf16.mxu0 0
      %1046 = vmatmul.mubr.bf16.gmra.mxu0 %v1002
      %v1047 = vpop.f32.mrf.mxu0
      %v1048 = vadd.f32 0.0, %v1047
      %v1049 = vpop.f32.mrf.mxu0
      %v1050 = vpop.f32.mrf.mxu0
      %v1051 = vadd.f32 0.0, %v1050
      %v1052 = vpop.f32.mrf.mxu0
      %1053 = vmatprep.mubr.bf16.mxu0 0
      %1054 = vmatmul.mubr.bf16.gmra.mxu0 %v1005
      %v1055 = vpop.f32.mrf.mxu0
      %v1056 = vadd.f32 0.0, %v1055
      %v1057 = vpop.f32.mrf.mxu0
      %v1058 = vpop.f32.mrf.mxu0
      %v1059 = vadd.f32 0.0, %v1058
      %v1060 = vpop.f32.mrf.mxu0
      %1061 = vmatprep.mubr.bf16.mxu0 0
      %1062 = vmatmul.mubr.bf16.gmra.mxu0 %v1008
      %v1063 = vpop.f32.mrf.mxu0
      %v1064 = vadd.f32 0.0, %v1063
      %v1065 = vpop.f32.mrf.mxu0
      %v1066 = vpop.f32.mrf.mxu0
      %v1067 = vadd.f32 0.0, %v1066
      %v1068 = vpop.f32.mrf.mxu0
      %1069 = vmatprep.mubr.bf16.mxu0 0
      %1070 = vmatmul.mubr.bf16.gmra.mxu0 %v1011
      %v1071 = vpop.f32.mrf.mxu0
      %v1072 = vadd.f32 0.0, %v1071
      %v1073 = vpop.f32.mrf.mxu0
      %v1074 = vpop.f32.mrf.mxu0
      %v1075 = vadd.f32 0.0, %v1074
      %v1076 = vpop.f32.mrf.mxu0
      %1077 = vdwg.mxu0
      %v1078 = vpack.c.bf16 %v1051, %v1048
      %v1079 = vpack.c.bf16 %v1059, %v1056
      %v1080 = vpack.c.bf16 %v1067, %v1064
      %v1081 = vpack.c.bf16 %v1075, %v1072
      %v1086 = vunpack.c.l.b16 %v1078
      %v1087 = vunpack.c.h.b16 %v1078
      %v1088 = vunpack.c.l.b16 %v1079
      %v1089 = vunpack.c.h.b16 %v1079
      %v1090 = vunpack.c.l.b16 %v1080
      %v1091 = vunpack.c.h.b16 %v1080
      %v1092 = vunpack.c.l.b16 %v1081
      %v1093 = vunpack.c.h.b16 %v1081
      %v1094 = vpack.c.b16 %v1086, %v1086
      %v1095 = vpack.c.b16 %v1087, %v1087
      %v1096 = vpack.c.b16 %v1088, %v1088
      %v1097 = vpack.c.b16 %v1089, %v1089
      %v1098 = vpack.c.b16 %v1090, %v1090
      %v1099 = vpack.c.b16 %v1091, %v1091
      %v1100 = vpack.c.b16 %v1092, %v1092
      %v1101 = vpack.c.b16 %v1093, %v1093
      %1102 = vrot.lane.b32.xlu0 %v1094, 64
      %v1103 = vpop.permute.xlu0 %1102
      %1104 = vrot.lane.b32.xlu0 %v1095, 64
      %v1105 = vpop.permute.xlu0 %1104
      %1106 = vrot.lane.b32.xlu0 %v1096, 64
      %v1107 = vpop.permute.xlu0 %1106
      %1108 = vrot.lane.b32.xlu0 %v1097, 64
      %v1109 = vpop.permute.xlu0 %1108
      %1110 = vrot.lane.b32.xlu0 %v1098, 64
      %v1111 = vpop.permute.xlu0 %1110
      %1112 = vrot.lane.b32.xlu0 %v1099, 64
      %v1113 = vpop.permute.xlu0 %1112
      %1114 = vrot.lane.b32.xlu0 %v1100, 64
      %v1115 = vpop.permute.xlu0 %1114
      %1116 = vrot.lane.b32.xlu0 %v1101, 64
      %v1117 = vpop.permute.xlu0 %1116
      %1126 = vst.msk [vmem:[%s302 + $0x4] sm:$0xf] %vm859, %v1103
      %1127 = vst.msk [vmem:[%s302 + $0x24] sm:$0xf] %vm859, %v1105
      %1128 = vst.msk [vmem:[%s302 + $0x44] sm:$0xf] %vm859, %v1107
      %1129 = vst.msk [vmem:[%s302 + $0x64] sm:$0xf] %vm859, %v1109
      %1130 = vst.msk [vmem:[%s302 + $0x84] sm:$0xf] %vm859, %v1111
      %1131 = vst.msk [vmem:[%s302 + $0xa4] sm:$0xf] %vm859, %v1113
      %1132 = vst.msk [vmem:[%s302 + $0xc4] sm:$0xf] %vm859, %v1115
      %1133 = vst.msk [vmem:[%s302 + $0xe4] sm:$0xf] %vm859, %v1117
      %1134 = vrot.lane.b32.xlu0 %v587, 64
      %v1135 = vpop.permute.xlu0 %1134
      %1136 = vrot.lane.b32.xlu0 %v589, 64
      %v1137 = vpop.permute.xlu0 %1136
      %1138 = vrot.lane.b32.xlu0 %v591, 64
      %v1139 = vpop.permute.xlu0 %1138
      %1140 = vrot.lane.b32.xlu0 %v593, 64
      %v1141 = vpop.permute.xlu0 %1140
      %v1143 = vsel %vm603, %v1135, 0
      %v1146 = vsel %vm603, %v1137, 0
      %v1149 = vsel %vm603, %v1139, 0
      %v1152 = vsel %vm603, %v1141, 0
      %1154 = vmatprep.subr.bf16.mxu0 0
      %1155 = vmatpush1.bf16.msra.mxu0 0
      %1156 = vmatprep.subr.bf16.mxu0 0
      %1157 = vmatpush1.bf16.msra.mxu0 0
      %1158 = vmatprep.subr.bf16.mxu0 0
      %1159 = vmatpush1.bf16.msra.mxu0 0
      %1160 = vmatprep.subr.bf16.mxu0 0
      %1161 = vmatpush1.bf16.msra.mxu0 0
      %1162 = vmatprep.subr.bf16.mxu0 0
      %1163 = vmatpush1.bf16.msra.mxu0 0
      %1164 = vmatprep.subr.bf16.mxu0 0
      %1165 = vmatpush1.bf16.msra.mxu0 0
      %1166 = vmatprep.subr.bf16.mxu0 0
      %1167 = vmatpush1.bf16.msra.mxu0 0
      %1168 = vmatprep.subr.bf16.mxu0 0
      %1169 = vmatpush1.bf16.msra.mxu0 %v601
      %1170 = vmatprep.subr.bf16.mxu0 0
      %1171 = vmatpush2.bf16.msra.mxu0 0
      %1172 = vmatprep.subr.bf16.mxu0 0
      %1173 = vmatpush2.bf16.msra.mxu0 0
      %1174 = vmatprep.subr.bf16.mxu0 0
      %1175 = vmatpush2.bf16.msra.mxu0 0
      %1176 = vmatprep.subr.bf16.mxu0 0
      %1177 = vmatpush2.bf16.msra.mxu0 0
      %1178 = vmatprep.subr.bf16.mxu0 0
      %1179 = vmatpush2.bf16.msra.mxu0 0
      %1180 = vmatprep.subr.bf16.mxu0 0
      %1181 = vmatpush2.bf16.msra.mxu0 0
      %1182 = vmatprep.subr.bf16.mxu0 0
      %1183 = vmatpush2.bf16.msra.mxu0 0
      %1184 = vmatprep.subr.bf16.mxu0 0
      %1185 = vmatpush2.bf16.msra.mxu0 0
      %1186 = vmatprep.mubr.bf16.mxu0 0
      %1187 = vmatmul.mubr.bf16.gmra.mxu0 %v1143
      %v1188 = vpop.f32.mrf.mxu0
      %v1189 = vadd.f32 0.0, %v1188
      %v1190 = vpop.f32.mrf.mxu0
      %v1191 = vpop.f32.mrf.mxu0
      %v1192 = vadd.f32 0.0, %v1191
      %v1193 = vpop.f32.mrf.mxu0
      %1194 = vmatprep.mubr.bf16.mxu0 0
      %1195 = vmatmul.mubr.bf16.gmra.mxu0 %v1146
      %v1196 = vpop.f32.mrf.mxu0
      %v1197 = vadd.f32 0.0, %v1196
      %v1198 = vpop.f32.mrf.mxu0
      %v1199 = vpop.f32.mrf.mxu0
      %v1200 = vadd.f32 0.0, %v1199
      %v1201 = vpop.f32.mrf.mxu0
      %1202 = vmatprep.mubr.bf16.mxu0 0
      %1203 = vmatmul.mubr.bf16.gmra.mxu0 %v1149
      %v1204 = vpop.f32.mrf.mxu0
      %v1205 = vadd.f32 0.0, %v1204
      %v1206 = vpop.f32.mrf.mxu0
      %v1207 = vpop.f32.mrf.mxu0
      %v1208 = vadd.f32 0.0, %v1207
      %v1209 = vpop.f32.mrf.mxu0
      %1210 = vmatprep.mubr.bf16.mxu0 0
      %1211 = vmatmul.mubr.bf16.gmra.mxu0 %v1152
      %v1212 = vpop.f32.mrf.mxu0
      %v1213 = vadd.f32 0.0, %v1212
      %v1214 = vpop.f32.mrf.mxu0
      %v1215 = vpop.f32.mrf.mxu0
      %v1216 = vadd.f32 0.0, %v1215
      %v1217 = vpop.f32.mrf.mxu0
      %1218 = vdwg.mxu0
      %v1219 = vpack.c.bf16 %v1192, %v1189
      %v1220 = vpack.c.bf16 %v1200, %v1197
      %v1221 = vpack.c.bf16 %v1208, %v1205
      %v1222 = vpack.c.bf16 %v1216, %v1213
      %v1227 = vunpack.c.l.b16 %v1219
      %v1228 = vunpack.c.h.b16 %v1219
      %v1229 = vunpack.c.l.b16 %v1220
      %v1230 = vunpack.c.h.b16 %v1220
      %v1231 = vunpack.c.l.b16 %v1221
      %v1232 = vunpack.c.h.b16 %v1221
      %v1233 = vunpack.c.l.b16 %v1222
      %v1234 = vunpack.c.h.b16 %v1222
      %v1235 = vpack.c.b16 %v1227, %v1227
      %v1236 = vpack.c.b16 %v1228, %v1228
      %v1237 = vpack.c.b16 %v1229, %v1229
      %v1238 = vpack.c.b16 %v1230, %v1230
      %v1239 = vpack.c.b16 %v1231, %v1231
      %v1240 = vpack.c.b16 %v1232, %v1232
      %v1241 = vpack.c.b16 %v1233, %v1233
      %v1242 = vpack.c.b16 %v1234, %v1234
      %1251 = vst.msk [vmem:[%s302 + $0x8] sm:$0xf] %vm713, %v1235
      %1252 = vst.msk [vmem:[%s302 + $0x28] sm:$0xf] %vm713, %v1236
      %1253 = vst.msk [vmem:[%s302 + $0x48] sm:$0xf] %vm713, %v1237
      %1254 = vst.msk [vmem:[%s302 + $0x68] sm:$0xf] %vm713, %v1238
      %1255 = vst.msk [vmem:[%s302 + $0x88] sm:$0xf] %vm713, %v1239
      %1256 = vst.msk [vmem:[%s302 + $0xa8] sm:$0xf] %vm713, %v1240
      %1257 = vst.msk [vmem:[%s302 + $0xc8] sm:$0xf] %vm713, %v1241
      %1258 = vst.msk [vmem:[%s302 + $0xe8] sm:$0xf] %vm713, %v1242
      %1259 = vrot.lane.b32.xlu0 %v587, 48
      %v1260 = vpop.permute.xlu0 %1259
      %1261 = vrot.lane.b32.xlu0 %v589, 48
      %v1262 = vpop.permute.xlu0 %1261
      %1263 = vrot.lane.b32.xlu0 %v591, 48
      %v1264 = vpop.permute.xlu0 %1263
      %1265 = vrot.lane.b32.xlu0 %v593, 48
      %v1266 = vpop.permute.xlu0 %1265
      %v1268 = vsel %vm603, %v1260, 0
      %v1271 = vsel %vm603, %v1262, 0
      %v1274 = vsel %vm603, %v1264, 0
      %v1277 = vsel %vm603, %v1266, 0
      %1279 = vmatprep.subr.bf16.mxu0 0
      %1280 = vmatpush1.bf16.msra.mxu0 0
      %1281 = vmatprep.subr.bf16.mxu0 0
      %1282 = vmatpush1.bf16.msra.mxu0 0
      %1283 = vmatprep.subr.bf16.mxu0 0
      %1284 = vmatpush1.bf16.msra.mxu0 0
      %1285 = vmatprep.subr.bf16.mxu0 0
      %1286 = vmatpush1.bf16.msra.mxu0 0
      %1287 = vmatprep.subr.bf16.mxu0 0
      %1288 = vmatpush1.bf16.msra.mxu0 0
      %1289 = vmatprep.subr.bf16.mxu0 0
      %1290 = vmatpush1.bf16.msra.mxu0 0
      %1291 = vmatprep.subr.bf16.mxu0 0
      %1292 = vmatpush1.bf16.msra.mxu0 0
      %1293 = vmatprep.subr.bf16.mxu0 0
      %1294 = vmatpush1.bf16.msra.mxu0 %v601
      %1295 = vmatprep.subr.bf16.mxu0 0
      %1296 = vmatpush2.bf16.msra.mxu0 0
      %1297 = vmatprep.subr.bf16.mxu0 0
      %1298 = vmatpush2.bf16.msra.mxu0 0
      %1299 = vmatprep.subr.bf16.mxu0 0
      %1300 = vmatpush2.bf16.msra.mxu0 0
      %1301 = vmatprep.subr.bf16.mxu0 0
      %1302 = vmatpush2.bf16.msra.mxu0 0
      %1303 = vmatprep.subr.bf16.mxu0 0
      %1304 = vmatpush2.bf16.msra.mxu0 0
      %1305 = vmatprep.subr.bf16.mxu0 0
      %1306 = vmatpush2.bf16.msra.mxu0 0
      %1307 = vmatprep.subr.bf16.mxu0 0
      %1308 = vmatpush2.bf16.msra.mxu0 0
      %1309 = vmatprep.subr.bf16.mxu0 0
      %1310 = vmatpush2.bf16.msra.mxu0 0
      %1311 = vmatprep.mubr.bf16.mxu0 0
      %1312 = vmatmul.mubr.bf16.gmra.mxu0 %v1268
      %v1313 = vpop.f32.mrf.mxu0
      %v1314 = vadd.f32 0.0, %v1313
      %v1315 = vpop.f32.mrf.mxu0
      %v1316 = vpop.f32.mrf.mxu0
      %v1317 = vadd.f32 0.0, %v1316
      %v1318 = vpop.f32.mrf.mxu0
      %1319 = vmatprep.mubr.bf16.mxu0 0
      %1320 = vmatmul.mubr.bf16.gmra.mxu0 %v1271
      %v1321 = vpop.f32.mrf.mxu0
      %v1322 = vadd.f32 0.0, %v1321
      %v1323 = vpop.f32.mrf.mxu0
      %v1324 = vpop.f32.mrf.mxu0
      %v1325 = vadd.f32 0.0, %v1324
      %v1326 = vpop.f32.mrf.mxu0
      %1327 = vmatprep.mubr.bf16.mxu0 0
      %1328 = vmatmul.mubr.bf16.gmra.mxu0 %v1274
      %v1329 = vpop.f32.mrf.mxu0
      %v1330 = vadd.f32 0.0, %v1329
      %v1331 = vpop.f32.mrf.mxu0
      %v1332 = vpop.f32.mrf.mxu0
      %v1333 = vadd.f32 0.0, %v1332
      %v1334 = vpop.f32.mrf.mxu0
      %1335 = vmatprep.mubr.bf16.mxu0 0
      %1336 = vmatmul.mubr.bf16.gmra.mxu0 %v1277
      %v1337 = vpop.f32.mrf.mxu0
      %v1338 = vadd.f32 0.0, %v1337
      %v1339 = vpop.f32.mrf.mxu0
      %v1340 = vpop.f32.mrf.mxu0
      %v1341 = vadd.f32 0.0, %v1340
      %v1342 = vpop.f32.mrf.mxu0
      %1343 = vdwg.mxu0
      %v1344 = vpack.c.bf16 %v1317, %v1314
      %v1345 = vpack.c.bf16 %v1325, %v1322
      %v1346 = vpack.c.bf16 %v1333, %v1330
      %v1347 = vpack.c.bf16 %v1341, %v1338
      %v1352 = vunpack.c.l.b16 %v1344
      %v1353 = vunpack.c.h.b16 %v1344
      %v1354 = vunpack.c.l.b16 %v1345
      %v1355 = vunpack.c.h.b16 %v1345
      %v1356 = vunpack.c.l.b16 %v1346
      %v1357 = vunpack.c.h.b16 %v1346
      %v1358 = vunpack.c.l.b16 %v1347
      %v1359 = vunpack.c.h.b16 %v1347
      %v1360 = vpack.c.b16 %v1352, %v1352
      %v1361 = vpack.c.b16 %v1353, %v1353
      %v1362 = vpack.c.b16 %v1354, %v1354
      %v1363 = vpack.c.b16 %v1355, %v1355
      %v1364 = vpack.c.b16 %v1356, %v1356
      %v1365 = vpack.c.b16 %v1357, %v1357
      %v1366 = vpack.c.b16 %v1358, %v1358
      %v1367 = vpack.c.b16 %v1359, %v1359
      %1368 = vrot.lane.b32.xlu0 %v1360, 64
      %v1369 = vpop.permute.xlu0 %1368
      %1370 = vrot.lane.b32.xlu0 %v1361, 64
      %v1371 = vpop.permute.xlu0 %1370
      %1372 = vrot.lane.b32.xlu0 %v1362, 64
      %v1373 = vpop.permute.xlu0 %1372
      %1374 = vrot.lane.b32.xlu0 %v1363, 64
      %v1375 = vpop.permute.xlu0 %1374
      %1376 = vrot.lane.b32.xlu0 %v1364, 64
      %v1377 = vpop.permute.xlu0 %1376
      %1378 = vrot.lane.b32.xlu0 %v1365, 64
      %v1379 = vpop.permute.xlu0 %1378
      %1380 = vrot.lane.b32.xlu0 %v1366, 64
      %v1381 = vpop.permute.xlu0 %1380
      %1382 = vrot.lane.b32.xlu0 %v1367, 64
      %v1383 = vpop.permute.xlu0 %1382
      %1392 = vst.msk [vmem:[%s302 + $0x8] sm:$0xf] %vm859, %v1369
      %1393 = vst.msk [vmem:[%s302 + $0x28] sm:$0xf] %vm859, %v1371
      %1394 = vst.msk [vmem:[%s302 + $0x48] sm:$0xf] %vm859, %v1373
      %1395 = vst.msk [vmem:[%s302 + $0x68] sm:$0xf] %vm859, %v1375
      %1396 = vst.msk [vmem:[%s302 + $0x88] sm:$0xf] %vm859, %v1377
      %1397 = vst.msk [vmem:[%s302 + $0xa8] sm:$0xf] %vm859, %v1379
      %1398 = vst.msk [vmem:[%s302 + $0xc8] sm:$0xf] %vm859, %v1381
      %1399 = vst.msk [vmem:[%s302 + $0xe8] sm:$0xf] %vm859, %v1383
      %1400 = vrot.lane.b32.xlu0 %v587, 32
      %v1401 = vpop.permute.xlu0 %1400
      %1402 = vrot.lane.b32.xlu0 %v589, 32
      %v1403 = vpop.permute.xlu0 %1402
      %1404 = vrot.lane.b32.xlu0 %v591, 32
      %v1405 = vpop.permute.xlu0 %1404
      %1406 = vrot.lane.b32.xlu0 %v593, 32
      %v1407 = vpop.permute.xlu0 %1406
      %v1409 = vsel %vm603, %v1401, 0
      %v1412 = vsel %vm603, %v1403, 0
      %v1415 = vsel %vm603, %v1405, 0
      %v1418 = vsel %vm603, %v1407, 0
      %1420 = vmatprep.subr.bf16.mxu0 0
      %1421 = vmatpush1.bf16.msra.mxu0 0
      %1422 = vmatprep.subr.bf16.mxu0 0
      %1423 = vmatpush1.bf16.msra.mxu0 0
      %1424 = vmatprep.subr.bf16.mxu0 0
      %1425 = vmatpush1.bf16.msra.mxu0 0
      %1426 = vmatprep.subr.bf16.mxu0 0
      %1427 = vmatpush1.bf16.msra.mxu0 0
      %1428 = vmatprep.subr.bf16.mxu0 0
      %1429 = vmatpush1.bf16.msra.mxu0 0
      %1430 = vmatprep.subr.bf16.mxu0 0
      %1431 = vmatpush1.bf16.msra.mxu0 0
      %1432 = vmatprep.subr.bf16.mxu0 0
      %1433 = vmatpush1.bf16.msra.mxu0 0
      %1434 = vmatprep.subr.bf16.mxu0 0
      %1435 = vmatpush1.bf16.msra.mxu0 %v601
      %1436 = vmatprep.subr.bf16.mxu0 0
      %1437 = vmatpush2.bf16.msra.mxu0 0
      %1438 = vmatprep.subr.bf16.mxu0 0
      %1439 = vmatpush2.bf16.msra.mxu0 0
      %1440 = vmatprep.subr.bf16.mxu0 0
      %1441 = vmatpush2.bf16.msra.mxu0 0
      %1442 = vmatprep.subr.bf16.mxu0 0
      %1443 = vmatpush2.bf16.msra.mxu0 0
      %1444 = vmatprep.subr.bf16.mxu0 0
      %1445 = vmatpush2.bf16.msra.mxu0 0
      %1446 = vmatprep.subr.bf16.mxu0 0
      %1447 = vmatpush2.bf16.msra.mxu0 0
      %1448 = vmatprep.subr.bf16.mxu0 0
      %1449 = vmatpush2.bf16.msra.mxu0 0
      %1450 = vmatprep.subr.bf16.mxu0 0
      %1451 = vmatpush2.bf16.msra.mxu0 0
      %1452 = vmatprep.mubr.bf16.mxu0 0
      %1453 = vmatmul.mubr.bf16.gmra.mxu0 %v1409
      %v1454 = vpop.f32.mrf.mxu0
      %v1455 = vadd.f32 0.0, %v1454
      %v1456 = vpop.f32.mrf.mxu0
      %v1457 = vpop.f32.mrf.mxu0
      %v1458 = vadd.f32 0.0, %v1457
      %v1459 = vpop.f32.mrf.mxu0
      %1460 = vmatprep.mubr.bf16.mxu0 0
      %1461 = vmatmul.mubr.bf16.gmra.mxu0 %v1412
      %v1462 = vpop.f32.mrf.mxu0
      %v1463 = vadd.f32 0.0, %v1462
      %v1464 = vpop.f32.mrf.mxu0
      %v1465 = vpop.f32.mrf.mxu0
      %v1466 = vadd.f32 0.0, %v1465
      %v1467 = vpop.f32.mrf.mxu0
      %1468 = vmatprep.mubr.bf16.mxu0 0
      %1469 = vmatmul.mubr.bf16.gmra.mxu0 %v1415
      %v1470 = vpop.f32.mrf.mxu0
      %v1471 = vadd.f32 0.0, %v1470
      %v1472 = vpop.f32.mrf.mxu0
      %v1473 = vpop.f32.mrf.mxu0
      %v1474 = vadd.f32 0.0, %v1473
      %v1475 = vpop.f32.mrf.mxu0
      %1476 = vmatprep.mubr.bf16.mxu0 0
      %1477 = vmatmul.mubr.bf16.gmra.mxu0 %v1418
      %v1478 = vpop.f32.mrf.mxu0
      %v1479 = vadd.f32 0.0, %v1478
      %v1480 = vpop.f32.mrf.mxu0
      %v1481 = vpop.f32.mrf.mxu0
      %v1482 = vadd.f32 0.0, %v1481
      %v1483 = vpop.f32.mrf.mxu0
      %1484 = vdwg.mxu0
      %v1485 = vpack.c.bf16 %v1458, %v1455
      %v1486 = vpack.c.bf16 %v1466, %v1463
      %v1487 = vpack.c.bf16 %v1474, %v1471
      %v1488 = vpack.c.bf16 %v1482, %v1479
      %v1493 = vunpack.c.l.b16 %v1485
      %v1494 = vunpack.c.h.b16 %v1485
      %v1495 = vunpack.c.l.b16 %v1486
      %v1496 = vunpack.c.h.b16 %v1486
      %v1497 = vunpack.c.l.b16 %v1487
      %v1498 = vunpack.c.h.b16 %v1487
      %v1499 = vunpack.c.l.b16 %v1488
      %v1500 = vunpack.c.h.b16 %v1488
      %v1501 = vpack.c.b16 %v1493, %v1493
      %v1502 = vpack.c.b16 %v1494, %v1494
      %v1503 = vpack.c.b16 %v1495, %v1495
      %v1504 = vpack.c.b16 %v1496, %v1496
      %v1505 = vpack.c.b16 %v1497, %v1497
      %v1506 = vpack.c.b16 %v1498, %v1498
      %v1507 = vpack.c.b16 %v1499, %v1499
      %v1508 = vpack.c.b16 %v1500, %v1500
      %1517 = vst.msk [vmem:[%s302 + $0xc] sm:$0xf] %vm713, %v1501
      %1518 = vst.msk [vmem:[%s302 + $0x2c] sm:$0xf] %vm713, %v1502
      %1519 = vst.msk [vmem:[%s302 + $0x4c] sm:$0xf] %vm713, %v1503
      %1520 = vst.msk [vmem:[%s302 + $0x6c] sm:$0xf] %vm713, %v1504
      %1521 = vst.msk [vmem:[%s302 + $0x8c] sm:$0xf] %vm713, %v1505
      %1522 = vst.msk [vmem:[%s302 + $0xac] sm:$0xf] %vm713, %v1506
      %1523 = vst.msk [vmem:[%s302 + $0xcc] sm:$0xf] %vm713, %v1507
      %1524 = vst.msk [vmem:[%s302 + $0xec] sm:$0xf] %vm713, %v1508
      %1525 = vrot.lane.b32.xlu0 %v587, 16
      %v1526 = vpop.permute.xlu0 %1525
      %1527 = vrot.lane.b32.xlu0 %v589, 16
      %v1528 = vpop.permute.xlu0 %1527
      %1529 = vrot.lane.b32.xlu0 %v591, 16
      %v1530 = vpop.permute.xlu0 %1529
      %1531 = vrot.lane.b32.xlu0 %v593, 16
      %v1532 = vpop.permute.xlu0 %1531
      %v1534 = vsel %vm603, %v1526, 0
      %v1537 = vsel %vm603, %v1528, 0
      %v1540 = vsel %vm603, %v1530, 0
      %v1543 = vsel %vm603, %v1532, 0
      %1545 = vmatprep.subr.bf16.mxu0 0
      %1546 = vmatpush1.bf16.msra.mxu0 0
      %1547 = vmatprep.subr.bf16.mxu0 0
      %1548 = vmatpush1.bf16.msra.mxu0 0
      %1549 = vmatprep.subr.bf16.mxu0 0
      %1550 = vmatpush1.bf16.msra.mxu0 0
      %1551 = vmatprep.subr.bf16.mxu0 0
      %1552 = vmatpush1.bf16.msra.mxu0 0
      %1553 = vmatprep.subr.bf16.mxu0 0
      %1554 = vmatpush1.bf16.msra.mxu0 0
      %1555 = vmatprep.subr.bf16.mxu0 0
      %1556 = vmatpush1.bf16.msra.mxu0 0
      %1557 = vmatprep.subr.bf16.mxu0 0
      %1558 = vmatpush1.bf16.msra.mxu0 0
      %1559 = vmatprep.subr.bf16.mxu0 0
      %1560 = vmatpush1.bf16.msra.mxu0 %v601
      %1561 = vmatprep.subr.bf16.mxu0 0
      %1562 = vmatpush2.bf16.msra.mxu0 0
      %1563 = vmatprep.subr.bf16.mxu0 0
      %1564 = vmatpush2.bf16.msra.mxu0 0
      %1565 = vmatprep.subr.bf16.mxu0 0
      %1566 = vmatpush2.bf16.msra.mxu0 0
      %1567 = vmatprep.subr.bf16.mxu0 0
      %1568 = vmatpush2.bf16.msra.mxu0 0
      %1569 = vmatprep.subr.bf16.mxu0 0
      %1570 = vmatpush2.bf16.msra.mxu0 0
      %1571 = vmatprep.subr.bf16.mxu0 0
      %1572 = vmatpush2.bf16.msra.mxu0 0
      %1573 = vmatprep.subr.bf16.mxu0 0
      %1574 = vmatpush2.bf16.msra.mxu0 0
      %1575 = vmatprep.subr.bf16.mxu0 0
      %1576 = vmatpush2.bf16.msra.mxu0 0
      %1577 = vmatprep.mubr.bf16.mxu0 0
      %1578 = vmatmul.mubr.bf16.gmra.mxu0 %v1534
      %v1579 = vpop.f32.mrf.mxu0
      %v1580 = vadd.f32 0.0, %v1579
      %v1581 = vpop.f32.mrf.mxu0
      %v1582 = vpop.f32.mrf.mxu0
      %v1583 = vadd.f32 0.0, %v1582
      %v1584 = vpop.f32.mrf.mxu0
      %1585 = vmatprep.mubr.bf16.mxu0 0
      %1586 = vmatmul.mubr.bf16.gmra.mxu0 %v1537
      %v1587 = vpop.f32.mrf.mxu0
      %v1588 = vadd.f32 0.0, %v1587
      %v1589 = vpop.f32.mrf.mxu0
      %v1590 = vpop.f32.mrf.mxu0
      %v1591 = vadd.f32 0.0, %v1590
      %v1592 = vpop.f32.mrf.mxu0
      %1593 = vmatprep.mubr.bf16.mxu0 0
      %1594 = vmatmul.mubr.bf16.gmra.mxu0 %v1540
      %v1595 = vpop.f32.mrf.mxu0
      %v1596 = vadd.f32 0.0, %v1595
      %v1597 = vpop.f32.mrf.mxu0
      %v1598 = vpop.f32.mrf.mxu0
      %v1599 = vadd.f32 0.0, %v1598
      %v1600 = vpop.f32.mrf.mxu0
      %1601 = vmatprep.mubr.bf16.mxu0 0
      %1602 = vmatmul.mubr.bf16.gmra.mxu0 %v1543
      %v1603 = vpop.f32.mrf.mxu0
      %v1604 = vadd.f32 0.0, %v1603
      %v1605 = vpop.f32.mrf.mxu0
      %v1606 = vpop.f32.mrf.mxu0
      %v1607 = vadd.f32 0.0, %v1606
      %v1608 = vpop.f32.mrf.mxu0
      %1609 = vdwg.mxu0
      %v1610 = vpack.c.bf16 %v1583, %v1580
      %v1611 = vpack.c.bf16 %v1591, %v1588
      %v1612 = vpack.c.bf16 %v1599, %v1596
      %v1613 = vpack.c.bf16 %v1607, %v1604
      %v1618 = vunpack.c.l.b16 %v1610
      %v1619 = vunpack.c.h.b16 %v1610
      %v1620 = vunpack.c.l.b16 %v1611
      %v1621 = vunpack.c.h.b16 %v1611
      %v1622 = vunpack.c.l.b16 %v1612
      %v1623 = vunpack.c.h.b16 %v1612
      %v1624 = vunpack.c.l.b16 %v1613
      %v1625 = vunpack.c.h.b16 %v1613
      %v1626 = vpack.c.b16 %v1618, %v1618
      %v1627 = vpack.c.b16 %v1619, %v1619
      %v1628 = vpack.c.b16 %v1620, %v1620
      %v1629 = vpack.c.b16 %v1621, %v1621
      %v1630 = vpack.c.b16 %v1622, %v1622
      %v1631 = vpack.c.b16 %v1623, %v1623
      %v1632 = vpack.c.b16 %v1624, %v1624
      %v1633 = vpack.c.b16 %v1625, %v1625
      %1634 = vrot.lane.b32.xlu0 %v1626, 64
      %v1635 = vpop.permute.xlu0 %1634
      %1636 = vrot.lane.b32.xlu0 %v1627, 64
      %v1637 = vpop.permute.xlu0 %1636
      %1638 = vrot.lane.b32.xlu0 %v1628, 64
      %v1639 = vpop.permute.xlu0 %1638
      %1640 = vrot.lane.b32.xlu0 %v1629, 64
      %v1641 = vpop.permute.xlu0 %1640
      %1642 = vrot.lane.b32.xlu0 %v1630, 64
      %v1643 = vpop.permute.xlu0 %1642
      %1644 = vrot.lane.b32.xlu0 %v1631, 64
      %v1645 = vpop.permute.xlu0 %1644
      %1646 = vrot.lane.b32.xlu0 %v1632, 64
      %v1647 = vpop.permute.xlu0 %1646
      %1648 = vrot.lane.b32.xlu0 %v1633, 64
      %v1649 = vpop.permute.xlu0 %1648
      %1658 = vst.msk [vmem:[%s302 + $0xc] sm:$0xf] %vm859, %v1635
      %1659 = vst.msk [vmem:[%s302 + $0x2c] sm:$0xf] %vm859, %v1637
      %1660 = vst.msk [vmem:[%s302 + $0x4c] sm:$0xf] %vm859, %v1639
      %1661 = vst.msk [vmem:[%s302 + $0x6c] sm:$0xf] %vm859, %v1641
      %1662 = vst.msk [vmem:[%s302 + $0x8c] sm:$0xf] %vm859, %v1643
      %1663 = vst.msk [vmem:[%s302 + $0xac] sm:$0xf] %vm859, %v1645
      %1664 = vst.msk [vmem:[%s302 + $0xcc] sm:$0xf] %vm859, %v1647
      %1665 = vst.msk [vmem:[%s302 + $0xec] sm:$0xf] %vm859, %v1649
      %v1667 = vsel %vm603, %v588, 0
      %v1670 = vsel %vm603, %v590, 0
      %v1673 = vsel %vm603, %v592, 0
      %v1676 = vsel %vm603, %v594, 0
      %1678 = vmatprep.subr.bf16.mxu0 0
      %1679 = vmatpush1.bf16.msra.mxu0 0
      %1680 = vmatprep.subr.bf16.mxu0 0
      %1681 = vmatpush1.bf16.msra.mxu0 0
      %1682 = vmatprep.subr.bf16.mxu0 0
      %1683 = vmatpush1.bf16.msra.mxu0 0
      %1684 = vmatprep.subr.bf16.mxu0 0
      %1685 = vmatpush1.bf16.msra.mxu0 0
      %1686 = vmatprep.subr.bf16.mxu0 0
      %1687 = vmatpush1.bf16.msra.mxu0 0
      %1688 = vmatprep.subr.bf16.mxu0 0
      %1689 = vmatpush1.bf16.msra.mxu0 0
      %1690 = vmatprep.subr.bf16.mxu0 0
      %1691 = vmatpush1.bf16.msra.mxu0 0
      %1692 = vmatprep.subr.bf16.mxu0 0
      %1693 = vmatpush1.bf16.msra.mxu0 %v601
      %1694 = vmatprep.subr.bf16.mxu0 0
      %1695 = vmatpush2.bf16.msra.mxu0 0
      %1696 = vmatprep.subr.bf16.mxu0 0
      %1697 = vmatpush2.bf16.msra.mxu0 0
      %1698 = vmatprep.subr.bf16.mxu0 0
      %1699 = vmatpush2.bf16.msra.mxu0 0
      %1700 = vmatprep.subr.bf16.mxu0 0
      %1701 = vmatpush2.bf16.msra.mxu0 0
      %1702 = vmatprep.subr.bf16.mxu0 0
      %1703 = vmatpush2.bf16.msra.mxu0 0
      %1704 = vmatprep.subr.bf16.mxu0 0
      %1705 = vmatpush2.bf16.msra.mxu0 0
      %1706 = vmatprep.subr.bf16.mxu0 0
      %1707 = vmatpush2.bf16.msra.mxu0 0
      %1708 = vmatprep.subr.bf16.mxu0 0
      %1709 = vmatpush2.bf16.msra.mxu0 0
      %1710 = vmatprep.mubr.bf16.mxu0 0
      %1711 = vmatmul.mubr.bf16.gmra.mxu0 %v1667
      %v1712 = vpop.f32.mrf.mxu0
      %v1713 = vadd.f32 0.0, %v1712
      %v1714 = vpop.f32.mrf.mxu0
      %v1715 = vpop.f32.mrf.mxu0
      %v1716 = vadd.f32 0.0, %v1715
      %v1717 = vpop.f32.mrf.mxu0
      %1718 = vmatprep.mubr.bf16.mxu0 0
      %1719 = vmatmul.mubr.bf16.gmra.mxu0 %v1670
      %v1720 = vpop.f32.mrf.mxu0
      %v1721 = vadd.f32 0.0, %v1720
      %v1722 = vpop.f32.mrf.mxu0
      %v1723 = vpop.f32.mrf.mxu0
      %v1724 = vadd.f32 0.0, %v1723
      %v1725 = vpop.f32.mrf.mxu0
      %1726 = vmatprep.mubr.bf16.mxu0 0
      %1727 = vmatmul.mubr.bf16.gmra.mxu0 %v1673
      %v1728 = vpop.f32.mrf.mxu0
      %v1729 = vadd.f32 0.0, %v1728
      %v1730 = vpop.f32.mrf.mxu0
      %v1731 = vpop.f32.mrf.mxu0
      %v1732 = vadd.f32 0.0, %v1731
      %v1733 = vpop.f32.mrf.mxu0
      %1734 = vmatprep.mubr.bf16.mxu0 0
      %1735 = vmatmul.mubr.bf16.gmra.mxu0 %v1676
      %v1736 = vpop.f32.mrf.mxu0
      %v1737 = vadd.f32 0.0, %v1736
      %v1738 = vpop.f32.mrf.mxu0
      %v1739 = vpop.f32.mrf.mxu0
      %v1740 = vadd.f32 0.0, %v1739
      %v1741 = vpop.f32.mrf.mxu0
      %1742 = vdwg.mxu0
      %v1743 = vpack.c.bf16 %v1716, %v1713
      %v1744 = vpack.c.bf16 %v1724, %v1721
      %v1745 = vpack.c.bf16 %v1732, %v1729
      %v1746 = vpack.c.bf16 %v1740, %v1737
      %v1751 = vunpack.c.l.b16 %v1743
      %v1752 = vunpack.c.h.b16 %v1743
      %v1753 = vunpack.c.l.b16 %v1744
      %v1754 = vunpack.c.h.b16 %v1744
      %v1755 = vunpack.c.l.b16 %v1745
      %v1756 = vunpack.c.h.b16 %v1745
      %v1757 = vunpack.c.l.b16 %v1746
      %v1758 = vunpack.c.h.b16 %v1746
      %v1759 = vpack.c.b16 %v1751, %v1751
      %v1760 = vpack.c.b16 %v1752, %v1752
      %v1761 = vpack.c.b16 %v1753, %v1753
      %v1762 = vpack.c.b16 %v1754, %v1754
      %v1763 = vpack.c.b16 %v1755, %v1755
      %v1764 = vpack.c.b16 %v1756, %v1756
      %v1765 = vpack.c.b16 %v1757, %v1757
      %v1766 = vpack.c.b16 %v1758, %v1758
      %1775 = vst.msk [vmem:[%s302 + $0x10] sm:$0xf] %vm713, %v1759
      %1776 = vst.msk [vmem:[%s302 + $0x30] sm:$0xf] %vm713, %v1760
      %1777 = vst.msk [vmem:[%s302 + $0x50] sm:$0xf] %vm713, %v1761
      %1778 = vst.msk [vmem:[%s302 + $0x70] sm:$0xf] %vm713, %v1762
      %1779 = vst.msk [vmem:[%s302 + $0x90] sm:$0xf] %vm713, %v1763
      %1780 = vst.msk [vmem:[%s302 + $0xb0] sm:$0xf] %vm713, %v1764
      %1781 = vst.msk [vmem:[%s302 + $0xd0] sm:$0xf] %vm713, %v1765
      %1782 = vst.msk [vmem:[%s302 + $0xf0] sm:$0xf] %vm713, %v1766
      %1787 = vrot.lane.b32.xlu0 %v588, 112
      %v1788 = vpop.permute.xlu0 %1787
      %1789 = vrot.lane.b32.xlu0 %v590, 112
      %v1790 = vpop.permute.xlu0 %1789
      %1791 = vrot.lane.b32.xlu0 %v592, 112
      %v1792 = vpop.permute.xlu0 %1791
      %1793 = vrot.lane.b32.xlu0 %v594, 112
      %v1794 = vpop.permute.xlu0 %1793
      %v1796 = vsel %vm603, %v1788, 0
      %v1799 = vsel %vm603, %v1790, 0
      %v1802 = vsel %vm603, %v1792, 0
      %v1805 = vsel %vm603, %v1794, 0
      %1807 = vmatprep.subr.bf16.mxu0 0
      %1808 = vmatpush1.bf16.msra.mxu0 0
      %1809 = vmatprep.subr.bf16.mxu0 0
      %1810 = vmatpush1.bf16.msra.mxu0 0
      %1811 = vmatprep.subr.bf16.mxu0 0
      %1812 = vmatpush1.bf16.msra.mxu0 0
      %1813 = vmatprep.subr.bf16.mxu0 0
      %1814 = vmatpush1.bf16.msra.mxu0 0
      %1815 = vmatprep.subr.bf16.mxu0 0
      %1816 = vmatpush1.bf16.msra.mxu0 0
      %1817 = vmatprep.subr.bf16.mxu0 0
      %1818 = vmatpush1.bf16.msra.mxu0 0
      %1819 = vmatprep.subr.bf16.mxu0 0
      %1820 = vmatpush1.bf16.msra.mxu0 0
      %1821 = vmatprep.subr.bf16.mxu0 0
      %1822 = vmatpush1.bf16.msra.mxu0 %v601
      %1823 = vmatprep.subr.bf16.mxu0 0
      %1824 = vmatpush2.bf16.msra.mxu0 0
      %1825 = vmatprep.subr.bf16.mxu0 0
      %1826 = vmatpush2.bf16.msra.mxu0 0
      %1827 = vmatprep.subr.bf16.mxu0 0
      %1828 = vmatpush2.bf16.msra.mxu0 0
      %1829 = vmatprep.subr.bf16.mxu0 0
      %1830 = vmatpush2.bf16.msra.mxu0 0
      %1831 = vmatprep.subr.bf16.mxu0 0
      %1832 = vmatpush2.bf16.msra.mxu0 0
      %1833 = vmatprep.subr.bf16.mxu0 0
      %1834 = vmatpush2.bf16.msra.mxu0 0
      %1835 = vmatprep.subr.bf16.mxu0 0
      %1836 = vmatpush2.bf16.msra.mxu0 0
      %1837 = vmatprep.subr.bf16.mxu0 0
      %1838 = vmatpush2.bf16.msra.mxu0 0
      %1839 = vmatprep.mubr.bf16.mxu0 0
      %1840 = vmatmul.mubr.bf16.gmra.mxu0 %v1796
      %v1841 = vpop.f32.mrf.mxu0
      %v1842 = vadd.f32 0.0, %v1841
      %v1843 = vpop.f32.mrf.mxu0
      %v1844 = vpop.f32.mrf.mxu0
      %v1845 = vadd.f32 0.0, %v1844
      %v1846 = vpop.f32.mrf.mxu0
      %1847 = vmatprep.mubr.bf16.mxu0 0
      %1848 = vmatmul.mubr.bf16.gmra.mxu0 %v1799
      %v1849 = vpop.f32.mrf.mxu0
      %v1850 = vadd.f32 0.0, %v1849
      %v1851 = vpop.f32.mrf.mxu0
      %v1852 = vpop.f32.mrf.mxu0
      %v1853 = vadd.f32 0.0, %v1852
      %v1854 = vpop.f32.mrf.mxu0
      %1855 = vmatprep.mubr.bf16.mxu0 0
      %1856 = vmatmul.mubr.bf16.gmra.mxu0 %v1802
      %v1857 = vpop.f32.mrf.mxu0
      %v1858 = vadd.f32 0.0, %v1857
      %v1859 = vpop.f32.mrf.mxu0
      %v1860 = vpop.f32.mrf.mxu0
      %v1861 = vadd.f32 0.0, %v1860
      %v1862 = vpop.f32.mrf.mxu0
      %1863 = vmatprep.mubr.bf16.mxu0 0
      %1864 = vmatmul.mubr.bf16.gmra.mxu0 %v1805
      %v1865 = vpop.f32.mrf.mxu0
      %v1866 = vadd.f32 0.0, %v1865
      %v1867 = vpop.f32.mrf.mxu0
      %v1868 = vpop.f32.mrf.mxu0
      %v1869 = vadd.f32 0.0, %v1868
      %v1870 = vpop.f32.mrf.mxu0
      %1871 = vdwg.mxu0
      %v1872 = vpack.c.bf16 %v1845, %v1842
      %v1873 = vpack.c.bf16 %v1853, %v1850
      %v1874 = vpack.c.bf16 %v1861, %v1858
      %v1875 = vpack.c.bf16 %v1869, %v1866
      %v1880 = vunpack.c.l.b16 %v1872
      %v1881 = vunpack.c.h.b16 %v1872
      %v1882 = vunpack.c.l.b16 %v1873
      %v1883 = vunpack.c.h.b16 %v1873
      %v1884 = vunpack.c.l.b16 %v1874
      %v1885 = vunpack.c.h.b16 %v1874
      %v1886 = vunpack.c.l.b16 %v1875
      %v1887 = vunpack.c.h.b16 %v1875
      %v1888 = vpack.c.b16 %v1880, %v1880
      %v1889 = vpack.c.b16 %v1881, %v1881
      %v1890 = vpack.c.b16 %v1882, %v1882
      %v1891 = vpack.c.b16 %v1883, %v1883
      %v1892 = vpack.c.b16 %v1884, %v1884
      %v1893 = vpack.c.b16 %v1885, %v1885
      %v1894 = vpack.c.b16 %v1886, %v1886
      %v1895 = vpack.c.b16 %v1887, %v1887
      %1896 = vrot.lane.b32.xlu0 %v1888, 64
      %v1897 = vpop.permute.xlu0 %1896
      %1898 = vrot.lane.b32.xlu0 %v1889, 64
      %v1899 = vpop.permute.xlu0 %1898
      %1900 = vrot.lane.b32.xlu0 %v1890, 64
      %v1901 = vpop.permute.xlu0 %1900
      %1902 = vrot.lane.b32.xlu0 %v1891, 64
      %v1903 = vpop.permute.xlu0 %1902
      %1904 = vrot.lane.b32.xlu0 %v1892, 64
      %v1905 = vpop.permute.xlu0 %1904
      %1906 = vrot.lane.b32.xlu0 %v1893, 64
      %v1907 = vpop.permute.xlu0 %1906
      %1908 = vrot.lane.b32.xlu0 %v1894, 64
      %v1909 = vpop.permute.xlu0 %1908
      %1910 = vrot.lane.b32.xlu0 %v1895, 64
      %v1911 = vpop.permute.xlu0 %1910
      %1920 = vst.msk [vmem:[%s302 + $0x10] sm:$0xf] %vm859, %v1897
      %1921 = vst.msk [vmem:[%s302 + $0x30] sm:$0xf] %vm859, %v1899
      %1922 = vst.msk [vmem:[%s302 + $0x50] sm:$0xf] %vm859, %v1901
      %1923 = vst.msk [vmem:[%s302 + $0x70] sm:$0xf] %vm859, %v1903
      %1924 = vst.msk [vmem:[%s302 + $0x90] sm:$0xf] %vm859, %v1905
      %1925 = vst.msk [vmem:[%s302 + $0xb0] sm:$0xf] %vm859, %v1907
      %1926 = vst.msk [vmem:[%s302 + $0xd0] sm:$0xf] %vm859, %v1909
      %1927 = vst.msk [vmem:[%s302 + $0xf0] sm:$0xf] %vm859, %v1911
      %1928 = vrot.lane.b32.xlu0 %v588, 96
      %v1929 = vpop.permute.xlu0 %1928
      %1930 = vrot.lane.b32.xlu0 %v590, 96
      %v1931 = vpop.permute.xlu0 %1930
      %1932 = vrot.lane.b32.xlu0 %v592, 96
      %v1933 = vpop.permute.xlu0 %1932
      %1934 = vrot.lane.b32.xlu0 %v594, 96
      %v1935 = vpop.permute.xlu0 %1934
      %v1937 = vsel %vm603, %v1929, 0
      %v1940 = vsel %vm603, %v1931, 0
      %v1943 = vsel %vm603, %v1933, 0
      %v1946 = vsel %vm603, %v1935, 0
      %1948 = vmatprep.subr.bf16.mxu0 0
      %1949 = vmatpush1.bf16.msra.mxu0 0
      %1950 = vmatprep.subr.bf16.mxu0 0
      %1951 = vmatpush1.bf16.msra.mxu0 0
      %1952 = vmatprep.subr.bf16.mxu0 0
      %1953 = vmatpush1.bf16.msra.mxu0 0
      %1954 = vmatprep.subr.bf16.mxu0 0
      %1955 = vmatpush1.bf16.msra.mxu0 0
      %1956 = vmatprep.subr.bf16.mxu0 0
      %1957 = vmatpush1.bf16.msra.mxu0 0
      %1958 = vmatprep.subr.bf16.mxu0 0
      %1959 = vmatpush1.bf16.msra.mxu0 0
      %1960 = vmatprep.subr.bf16.mxu0 0
      %1961 = vmatpush1.bf16.msra.mxu0 0
      %1962 = vmatprep.subr.bf16.mxu0 0
      %1963 = vmatpush1.bf16.msra.mxu0 %v601
      %1964 = vmatprep.subr.bf16.mxu0 0
      %1965 = vmatpush2.bf16.msra.mxu0 0
      %1966 = vmatprep.subr.bf16.mxu0 0
      %1967 = vmatpush2.bf16.msra.mxu0 0
      %1968 = vmatprep.subr.bf16.mxu0 0
      %1969 = vmatpush2.bf16.msra.mxu0 0
      %1970 = vmatprep.subr.bf16.mxu0 0
      %1971 = vmatpush2.bf16.msra.mxu0 0
      %1972 = vmatprep.subr.bf16.mxu0 0
      %1973 = vmatpush2.bf16.msra.mxu0 0
      %1974 = vmatprep.subr.bf16.mxu0 0
      %1975 = vmatpush2.bf16.msra.mxu0 0
      %1976 = vmatprep.subr.bf16.mxu0 0
      %1977 = vmatpush2.bf16.msra.mxu0 0
      %1978 = vmatprep.subr.bf16.mxu0 0
      %1979 = vmatpush2.bf16.msra.mxu0 0
      %1980 = vmatprep.mubr.bf16.mxu0 0
      %1981 = vmatmul.mubr.bf16.gmra.mxu0 %v1937
      %v1982 = vpop.f32.mrf.mxu0
      %v1983 = vadd.f32 0.0, %v1982
      %v1984 = vpop.f32.mrf.mxu0
      %v1985 = vpop.f32.mrf.mxu0
      %v1986 = vadd.f32 0.0, %v1985
      %v1987 = vpop.f32.mrf.mxu0
      %1988 = vmatprep.mubr.bf16.mxu0 0
      %1989 = vmatmul.mubr.bf16.gmra.mxu0 %v1940
      %v1990 = vpop.f32.mrf.mxu0
      %v1991 = vadd.f32 0.0, %v1990
      %v1992 = vpop.f32.mrf.mxu0
      %v1993 = vpop.f32.mrf.mxu0
      %v1994 = vadd.f32 0.0, %v1993
      %v1995 = vpop.f32.mrf.mxu0
      %1996 = vmatprep.mubr.bf16.mxu0 0
      %1997 = vmatmul.mubr.bf16.gmra.mxu0 %v1943
      %v1998 = vpop.f32.mrf.mxu0
      %v1999 = vadd.f32 0.0, %v1998
      %v2000 = vpop.f32.mrf.mxu0
      %v2001 = vpop.f32.mrf.mxu0
      %v2002 = vadd.f32 0.0, %v2001
      %v2003 = vpop.f32.mrf.mxu0
      %2004 = vmatprep.mubr.bf16.mxu0 0
      %2005 = vmatmul.mubr.bf16.gmra.mxu0 %v1946
      %v2006 = vpop.f32.mrf.mxu0
      %v2007 = vadd.f32 0.0, %v2006
      %v2008 = vpop.f32.mrf.mxu0
      %v2009 = vpop.f32.mrf.mxu0
      %v2010 = vadd.f32 0.0, %v2009
      %v2011 = vpop.f32.mrf.mxu0
      %2012 = vdwg.mxu0
      %v2013 = vpack.c.bf16 %v1986, %v1983
      %v2014 = vpack.c.bf16 %v1994, %v1991
      %v2015 = vpack.c.bf16 %v2002, %v1999
      %v2016 = vpack.c.bf16 %v2010, %v2007
      %v2021 = vunpack.c.l.b16 %v2013
      %v2022 = vunpack.c.h.b16 %v2013
      %v2023 = vunpack.c.l.b16 %v2014
      %v2024 = vunpack.c.h.b16 %v2014
      %v2025 = vunpack.c.l.b16 %v2015
      %v2026 = vunpack.c.h.b16 %v2015
      %v2027 = vunpack.c.l.b16 %v2016
      %v2028 = vunpack.c.h.b16 %v2016
      %v2029 = vpack.c.b16 %v2021, %v2021
      %v2030 = vpack.c.b16 %v2022, %v2022
      %v2031 = vpack.c.b16 %v2023, %v2023
      %v2032 = vpack.c.b16 %v2024, %v2024
      %v2033 = vpack.c.b16 %v2025, %v2025
      %v2034 = vpack.c.b16 %v2026, %v2026
      %v2035 = vpack.c.b16 %v2027, %v2027
      %v2036 = vpack.c.b16 %v2028, %v2028
      %2045 = vst.msk [vmem:[%s302 + $0x14] sm:$0xf] %vm713, %v2029
      %2046 = vst.msk [vmem:[%s302 + $0x34] sm:$0xf] %vm713, %v2030
      %2047 = vst.msk [vmem:[%s302 + $0x54] sm:$0xf] %vm713, %v2031
      %2048 = vst.msk [vmem:[%s302 + $0x74] sm:$0xf] %vm713, %v2032
      %2049 = vst.msk [vmem:[%s302 + $0x94] sm:$0xf] %vm713, %v2033
      %2050 = vst.msk [vmem:[%s302 + $0xb4] sm:$0xf] %vm713, %v2034
      %2051 = vst.msk [vmem:[%s302 + $0xd4] sm:$0xf] %vm713, %v2035
      %2052 = vst.msk [vmem:[%s302 + $0xf4] sm:$0xf] %vm713, %v2036
      %2053 = vrot.lane.b32.xlu0 %v588, 80
      %v2054 = vpop.permute.xlu0 %2053
      %2055 = vrot.lane.b32.xlu0 %v590, 80
      %v2056 = vpop.permute.xlu0 %2055
      %2057 = vrot.lane.b32.xlu0 %v592, 80
      %v2058 = vpop.permute.xlu0 %2057
      %2059 = vrot.lane.b32.xlu0 %v594, 80
      %v2060 = vpop.permute.xlu0 %2059
      %v2062 = vsel %vm603, %v2054, 0
      %v2065 = vsel %vm603, %v2056, 0
      %v2068 = vsel %vm603, %v2058, 0
      %v2071 = vsel %vm603, %v2060, 0
      %2073 = vmatprep.subr.bf16.mxu0 0
      %2074 = vmatpush1.bf16.msra.mxu0 0
      %2075 = vmatprep.subr.bf16.mxu0 0
      %2076 = vmatpush1.bf16.msra.mxu0 0
      %2077 = vmatprep.subr.bf16.mxu0 0
      %2078 = vmatpush1.bf16.msra.mxu0 0
      %2079 = vmatprep.subr.bf16.mxu0 0
      %2080 = vmatpush1.bf16.msra.mxu0 0
      %2081 = vmatprep.subr.bf16.mxu0 0
      %2082 = vmatpush1.bf16.msra.mxu0 0
      %2083 = vmatprep.subr.bf16.mxu0 0
      %2084 = vmatpush1.bf16.msra.mxu0 0
      %2085 = vmatprep.subr.bf16.mxu0 0
      %2086 = vmatpush1.bf16.msra.mxu0 0
      %2087 = vmatprep.subr.bf16.mxu0 0
      %2088 = vmatpush1.bf16.msra.mxu0 %v601
      %2089 = vmatprep.subr.bf16.mxu0 0
      %2090 = vmatpush2.bf16.msra.mxu0 0
      %2091 = vmatprep.subr.bf16.mxu0 0
      %2092 = vmatpush2.bf16.msra.mxu0 0
      %2093 = vmatprep.subr.bf16.mxu0 0
      %2094 = vmatpush2.bf16.msra.mxu0 0
      %2095 = vmatprep.subr.bf16.mxu0 0
      %2096 = vmatpush2.bf16.msra.mxu0 0
      %2097 = vmatprep.subr.bf16.mxu0 0
      %2098 = vmatpush2.bf16.msra.mxu0 0
      %2099 = vmatprep.subr.bf16.mxu0 0
      %2100 = vmatpush2.bf16.msra.mxu0 0
      %2101 = vmatprep.subr.bf16.mxu0 0
      %2102 = vmatpush2.bf16.msra.mxu0 0
      %2103 = vmatprep.subr.bf16.mxu0 0
      %2104 = vmatpush2.bf16.msra.mxu0 0
      %2105 = vmatprep.mubr.bf16.mxu0 0
      %2106 = vmatmul.mubr.bf16.gmra.mxu0 %v2062
      %v2107 = vpop.f32.mrf.mxu0
      %v2108 = vadd.f32 0.0, %v2107
      %v2109 = vpop.f32.mrf.mxu0
      %v2110 = vpop.f32.mrf.mxu0
      %v2111 = vadd.f32 0.0, %v2110
      %v2112 = vpop.f32.mrf.mxu0
      %2113 = vmatprep.mubr.bf16.mxu0 0
      %2114 = vmatmul.mubr.bf16.gmra.mxu0 %v2065
      %v2115 = vpop.f32.mrf.mxu0
      %v2116 = vadd.f32 0.0, %v2115
      %v2117 = vpop.f32.mrf.mxu0
      %v2118 = vpop.f32.mrf.mxu0
      %v2119 = vadd.f32 0.0, %v2118
      %v2120 = vpop.f32.mrf.mxu0
      %2121 = vmatprep.mubr.bf16.mxu0 0
      %2122 = vmatmul.mubr.bf16.gmra.mxu0 %v2068
      %v2123 = vpop.f32.mrf.mxu0
      %v2124 = vadd.f32 0.0, %v2123
      %v2125 = vpop.f32.mrf.mxu0
      %v2126 = vpop.f32.mrf.mxu0
      %v2127 = vadd.f32 0.0, %v2126
      %v2128 = vpop.f32.mrf.mxu0
      %2129 = vmatprep.mubr.bf16.mxu0 0
      %2130 = vmatmul.mubr.bf16.gmra.mxu0 %v2071
      %v2131 = vpop.f32.mrf.mxu0
      %v2132 = vadd.f32 0.0, %v2131
      %v2133 = vpop.f32.mrf.mxu0
      %v2134 = vpop.f32.mrf.mxu0
      %v2135 = vadd.f32 0.0, %v2134
      %v2136 = vpop.f32.mrf.mxu0
      %2137 = vdwg.mxu0
      %v2138 = vpack.c.bf16 %v2111, %v2108
      %v2139 = vpack.c.bf16 %v2119, %v2116
      %v2140 = vpack.c.bf16 %v2127, %v2124
      %v2141 = vpack.c.bf16 %v2135, %v2132
      %v2146 = vunpack.c.l.b16 %v2138
      %v2147 = vunpack.c.h.b16 %v2138
      %v2148 = vunpack.c.l.b16 %v2139
      %v2149 = vunpack.c.h.b16 %v2139
      %v2150 = vunpack.c.l.b16 %v2140
      %v2151 = vunpack.c.h.b16 %v2140
      %v2152 = vunpack.c.l.b16 %v2141
      %v2153 = vunpack.c.h.b16 %v2141
      %v2154 = vpack.c.b16 %v2146, %v2146
      %v2155 = vpack.c.b16 %v2147, %v2147
      %v2156 = vpack.c.b16 %v2148, %v2148
      %v2157 = vpack.c.b16 %v2149, %v2149
      %v2158 = vpack.c.b16 %v2150, %v2150
      %v2159 = vpack.c.b16 %v2151, %v2151
      %v2160 = vpack.c.b16 %v2152, %v2152
      %v2161 = vpack.c.b16 %v2153, %v2153
      %2162 = vrot.lane.b32.xlu0 %v2154, 64
      %v2163 = vpop.permute.xlu0 %2162
      %2164 = vrot.lane.b32.xlu0 %v2155, 64
      %v2165 = vpop.permute.xlu0 %2164
      %2166 = vrot.lane.b32.xlu0 %v2156, 64
      %v2167 = vpop.permute.xlu0 %2166
      %2168 = vrot.lane.b32.xlu0 %v2157, 64
      %v2169 = vpop.permute.xlu0 %2168
      %2170 = vrot.lane.b32.xlu0 %v2158, 64
      %v2171 = vpop.permute.xlu0 %2170
      %2172 = vrot.lane.b32.xlu0 %v2159, 64
      %v2173 = vpop.permute.xlu0 %2172
      %2174 = vrot.lane.b32.xlu0 %v2160, 64
      %v2175 = vpop.permute.xlu0 %2174
      %2176 = vrot.lane.b32.xlu0 %v2161, 64
      %v2177 = vpop.permute.xlu0 %2176
      %2186 = vst.msk [vmem:[%s302 + $0x14] sm:$0xf] %vm859, %v2163
      %2187 = vst.msk [vmem:[%s302 + $0x34] sm:$0xf] %vm859, %v2165
      %2188 = vst.msk [vmem:[%s302 + $0x54] sm:$0xf] %vm859, %v2167
      %2189 = vst.msk [vmem:[%s302 + $0x74] sm:$0xf] %vm859, %v2169
      %2190 = vst.msk [vmem:[%s302 + $0x94] sm:$0xf] %vm859, %v2171
      %2191 = vst.msk [vmem:[%s302 + $0xb4] sm:$0xf] %vm859, %v2173
      %2192 = vst.msk [vmem:[%s302 + $0xd4] sm:$0xf] %vm859, %v2175
      %2193 = vst.msk [vmem:[%s302 + $0xf4] sm:$0xf] %vm859, %v2177
      %2194 = vrot.lane.b32.xlu0 %v588, 64
      %v2195 = vpop.permute.xlu0 %2194
      %2196 = vrot.lane.b32.xlu0 %v590, 64
      %v2197 = vpop.permute.xlu0 %2196
      %2198 = vrot.lane.b32.xlu0 %v592, 64
      %v2199 = vpop.permute.xlu0 %2198
      %2200 = vrot.lane.b32.xlu0 %v594, 64
      %v2201 = vpop.permute.xlu0 %2200
      %v2203 = vsel %vm603, %v2195, 0
      %v2206 = vsel %vm603, %v2197, 0
      %v2209 = vsel %vm603, %v2199, 0
      %v2212 = vsel %vm603, %v2201, 0
      %2214 = vmatprep.subr.bf16.mxu0 0
      %2215 = vmatpush1.bf16.msra.mxu0 0
      %2216 = vmatprep.subr.bf16.mxu0 0
      %2217 = vmatpush1.bf16.msra.mxu0 0
      %2218 = vmatprep.subr.bf16.mxu0 0
      %2219 = vmatpush1.bf16.msra.mxu0 0
      %2220 = vmatprep.subr.bf16.mxu0 0
      %2221 = vmatpush1.bf16.msra.mxu0 0
      %2222 = vmatprep.subr.bf16.mxu0 0
      %2223 = vmatpush1.bf16.msra.mxu0 0
      %2224 = vmatprep.subr.bf16.mxu0 0
      %2225 = vmatpush1.bf16.msra.mxu0 0
      %2226 = vmatprep.subr.bf16.mxu0 0
      %2227 = vmatpush1.bf16.msra.mxu0 0
      %2228 = vmatprep.subr.bf16.mxu0 0
      %2229 = vmatpush1.bf16.msra.mxu0 %v601
      %2230 = vmatprep.subr.bf16.mxu0 0
      %2231 = vmatpush2.bf16.msra.mxu0 0
      %2232 = vmatprep.subr.bf16.mxu0 0
      %2233 = vmatpush2.bf16.msra.mxu0 0
      %2234 = vmatprep.subr.bf16.mxu0 0
      %2235 = vmatpush2.bf16.msra.mxu0 0
      %2236 = vmatprep.subr.bf16.mxu0 0
      %2237 = vmatpush2.bf16.msra.mxu0 0
      %2238 = vmatprep.subr.bf16.mxu0 0
      %2239 = vmatpush2.bf16.msra.mxu0 0
      %2240 = vmatprep.subr.bf16.mxu0 0
      %2241 = vmatpush2.bf16.msra.mxu0 0
      %2242 = vmatprep.subr.bf16.mxu0 0
      %2243 = vmatpush2.bf16.msra.mxu0 0
      %2244 = vmatprep.subr.bf16.mxu0 0
      %2245 = vmatpush2.bf16.msra.mxu0 0
      %2246 = vmatprep.mubr.bf16.mxu0 0
      %2247 = vmatmul.mubr.bf16.gmra.mxu0 %v2203
      %v2248 = vpop.f32.mrf.mxu0
      %v2249 = vadd.f32 0.0, %v2248
      %v2250 = vpop.f32.mrf.mxu0
      %v2251 = vpop.f32.mrf.mxu0
      %v2252 = vadd.f32 0.0, %v2251
      %v2253 = vpop.f32.mrf.mxu0
      %2254 = vmatprep.mubr.bf16.mxu0 0
      %2255 = vmatmul.mubr.bf16.gmra.mxu0 %v2206
      %v2256 = vpop.f32.mrf.mxu0
      %v2257 = vadd.f32 0.0, %v2256
      %v2258 = vpop.f32.mrf.mxu0
      %v2259 = vpop.f32.mrf.mxu0
      %v2260 = vadd.f32 0.0, %v2259
      %v2261 = vpop.f32.mrf.mxu0
      %2262 = vmatprep.mubr.bf16.mxu0 0
      %2263 = vmatmul.mubr.bf16.gmra.mxu0 %v2209
      %v2264 = vpop.f32.mrf.mxu0
      %v2265 = vadd.f32 0.0, %v2264
      %v2266 = vpop.f32.mrf.mxu0
      %v2267 = vpop.f32.mrf.mxu0
      %v2268 = vadd.f32 0.0, %v2267
      %v2269 = vpop.f32.mrf.mxu0
      %2270 = vmatprep.mubr.bf16.mxu0 0
      %2271 = vmatmul.mubr.bf16.gmra.mxu0 %v2212
      %v2272 = vpop.f32.mrf.mxu0
      %v2273 = vadd.f32 0.0, %v2272
      %v2274 = vpop.f32.mrf.mxu0
      %v2275 = vpop.f32.mrf.mxu0
      %v2276 = vadd.f32 0.0, %v2275
      %v2277 = vpop.f32.mrf.mxu0
      %2278 = vdwg.mxu0
      %v2279 = vpack.c.bf16 %v2252, %v2249
      %v2280 = vpack.c.bf16 %v2260, %v2257
      %v2281 = vpack.c.bf16 %v2268, %v2265
      %v2282 = vpack.c.bf16 %v2276, %v2273
      %v2287 = vunpack.c.l.b16 %v2279
      %v2288 = vunpack.c.h.b16 %v2279
      %v2289 = vunpack.c.l.b16 %v2280
      %v2290 = vunpack.c.h.b16 %v2280
      %v2291 = vunpack.c.l.b16 %v2281
      %v2292 = vunpack.c.h.b16 %v2281
      %v2293 = vunpack.c.l.b16 %v2282
      %v2294 = vunpack.c.h.b16 %v2282
      %v2295 = vpack.c.b16 %v2287, %v2287
      %v2296 = vpack.c.b16 %v2288, %v2288
      %v2297 = vpack.c.b16 %v2289, %v2289
      %v2298 = vpack.c.b16 %v2290, %v2290
      %v2299 = vpack.c.b16 %v2291, %v2291
      %v2300 = vpack.c.b16 %v2292, %v2292
      %v2301 = vpack.c.b16 %v2293, %v2293
      %v2302 = vpack.c.b16 %v2294, %v2294
      %2311 = vst.msk [vmem:[%s302 + $0x18] sm:$0xf] %vm713, %v2295
      %2312 = vst.msk [vmem:[%s302 + $0x38] sm:$0xf] %vm713, %v2296
      %2313 = vst.msk [vmem:[%s302 + $0x58] sm:$0xf] %vm713, %v2297
      %2314 = vst.msk [vmem:[%s302 + $0x78] sm:$0xf] %vm713, %v2298
      %2315 = vst.msk [vmem:[%s302 + $0x98] sm:$0xf] %vm713, %v2299
      %2316 = vst.msk [vmem:[%s302 + $0xb8] sm:$0xf] %vm713, %v2300
      %2317 = vst.msk [vmem:[%s302 + $0xd8] sm:$0xf] %vm713, %v2301
      %2318 = vst.msk [vmem:[%s302 + $0xf8] sm:$0xf] %vm713, %v2302
      %2319 = vrot.lane.b32.xlu0 %v588, 48
      %v2320 = vpop.permute.xlu0 %2319
      %2321 = vrot.lane.b32.xlu0 %v590, 48
      %v2322 = vpop.permute.xlu0 %2321
      %2323 = vrot.lane.b32.xlu0 %v592, 48
      %v2324 = vpop.permute.xlu0 %2323
      %2325 = vrot.lane.b32.xlu0 %v594, 48
      %v2326 = vpop.permute.xlu0 %2325
      %v2328 = vsel %vm603, %v2320, 0
      %v2331 = vsel %vm603, %v2322, 0
      %v2334 = vsel %vm603, %v2324, 0
      %v2337 = vsel %vm603, %v2326, 0
      %2339 = vmatprep.subr.bf16.mxu0 0
      %2340 = vmatpush1.bf16.msra.mxu0 0
      %2341 = vmatprep.subr.bf16.mxu0 0
      %2342 = vmatpush1.bf16.msra.mxu0 0
      %2343 = vmatprep.subr.bf16.mxu0 0
      %2344 = vmatpush1.bf16.msra.mxu0 0
      %2345 = vmatprep.subr.bf16.mxu0 0
      %2346 = vmatpush1.bf16.msra.mxu0 0
      %2347 = vmatprep.subr.bf16.mxu0 0
      %2348 = vmatpush1.bf16.msra.mxu0 0
      %2349 = vmatprep.subr.bf16.mxu0 0
      %2350 = vmatpush1.bf16.msra.mxu0 0
      %2351 = vmatprep.subr.bf16.mxu0 0
      %2352 = vmatpush1.bf16.msra.mxu0 0
      %2353 = vmatprep.subr.bf16.mxu0 0
      %2354 = vmatpush1.bf16.msra.mxu0 %v601
      %2355 = vmatprep.subr.bf16.mxu0 0
      %2356 = vmatpush2.bf16.msra.mxu0 0
      %2357 = vmatprep.subr.bf16.mxu0 0
      %2358 = vmatpush2.bf16.msra.mxu0 0
      %2359 = vmatprep.subr.bf16.mxu0 0
      %2360 = vmatpush2.bf16.msra.mxu0 0
      %2361 = vmatprep.subr.bf16.mxu0 0
      %2362 = vmatpush2.bf16.msra.mxu0 0
      %2363 = vmatprep.subr.bf16.mxu0 0
      %2364 = vmatpush2.bf16.msra.mxu0 0
      %2365 = vmatprep.subr.bf16.mxu0 0
      %2366 = vmatpush2.bf16.msra.mxu0 0
      %2367 = vmatprep.subr.bf16.mxu0 0
      %2368 = vmatpush2.bf16.msra.mxu0 0
      %2369 = vmatprep.subr.bf16.mxu0 0
      %2370 = vmatpush2.bf16.msra.mxu0 0
      %2371 = vmatprep.mubr.bf16.mxu0 0
      %2372 = vmatmul.mubr.bf16.gmra.mxu0 %v2328
      %v2373 = vpop.f32.mrf.mxu0
      %v2374 = vadd.f32 0.0, %v2373
      %v2375 = vpop.f32.mrf.mxu0
      %v2376 = vpop.f32.mrf.mxu0
      %v2377 = vadd.f32 0.0, %v2376
      %v2378 = vpop.f32.mrf.mxu0
      %2379 = vmatprep.mubr.bf16.mxu0 0
      %2380 = vmatmul.mubr.bf16.gmra.mxu0 %v2331
      %v2381 = vpop.f32.mrf.mxu0
      %v2382 = vadd.f32 0.0, %v2381
      %v2383 = vpop.f32.mrf.mxu0
      %v2384 = vpop.f32.mrf.mxu0
      %v2385 = vadd.f32 0.0, %v2384
      %v2386 = vpop.f32.mrf.mxu0
      %2387 = vmatprep.mubr.bf16.mxu0 0
      %2388 = vmatmul.mubr.bf16.gmra.mxu0 %v2334
      %v2389 = vpop.f32.mrf.mxu0
      %v2390 = vadd.f32 0.0, %v2389
      %v2391 = vpop.f32.mrf.mxu0
      %v2392 = vpop.f32.mrf.mxu0
      %v2393 = vadd.f32 0.0, %v2392
      %v2394 = vpop.f32.mrf.mxu0
      %2395 = vmatprep.mubr.bf16.mxu0 0
      %2396 = vmatmul.mubr.bf16.gmra.mxu0 %v2337
      %v2397 = vpop.f32.mrf.mxu0
      %v2398 = vadd.f32 0.0, %v2397
      %v2399 = vpop.f32.mrf.mxu0
      %v2400 = vpop.f32.mrf.mxu0
      %v2401 = vadd.f32 0.0, %v2400
      %v2402 = vpop.f32.mrf.mxu0
      %2403 = vdwg.mxu0
      %v2404 = vpack.c.bf16 %v2377, %v2374
      %v2405 = vpack.c.bf16 %v2385, %v2382
      %v2406 = vpack.c.bf16 %v2393, %v2390
      %v2407 = vpack.c.bf16 %v2401, %v2398
      %v2412 = vunpack.c.l.b16 %v2404
      %v2413 = vunpack.c.h.b16 %v2404
      %v2414 = vunpack.c.l.b16 %v2405
      %v2415 = vunpack.c.h.b16 %v2405
      %v2416 = vunpack.c.l.b16 %v2406
      %v2417 = vunpack.c.h.b16 %v2406
      %v2418 = vunpack.c.l.b16 %v2407
      %v2419 = vunpack.c.h.b16 %v2407
      %v2420 = vpack.c.b16 %v2412, %v2412
      %v2421 = vpack.c.b16 %v2413, %v2413
      %v2422 = vpack.c.b16 %v2414, %v2414
      %v2423 = vpack.c.b16 %v2415, %v2415
      %v2424 = vpack.c.b16 %v2416, %v2416
      %v2425 = vpack.c.b16 %v2417, %v2417
      %v2426 = vpack.c.b16 %v2418, %v2418
      %v2427 = vpack.c.b16 %v2419, %v2419
      %2428 = vrot.lane.b32.xlu0 %v2420, 64
      %v2429 = vpop.permute.xlu0 %2428
      %2430 = vrot.lane.b32.xlu0 %v2421, 64
      %v2431 = vpop.permute.xlu0 %2430
      %2432 = vrot.lane.b32.xlu0 %v2422, 64
      %v2433 = vpop.permute.xlu0 %2432
      %2434 = vrot.lane.b32.xlu0 %v2423, 64
      %v2435 = vpop.permute.xlu0 %2434
      %2436 = vrot.lane.b32.xlu0 %v2424, 64
      %v2437 = vpop.permute.xlu0 %2436
      %2438 = vrot.lane.b32.xlu0 %v2425, 64
      %v2439 = vpop.permute.xlu0 %2438
      %2440 = vrot.lane.b32.xlu0 %v2426, 64
      %v2441 = vpop.permute.xlu0 %2440
      %2442 = vrot.lane.b32.xlu0 %v2427, 64
      %v2443 = vpop.permute.xlu0 %2442
      %2452 = vst.msk [vmem:[%s302 + $0x18] sm:$0xf] %vm859, %v2429
      %2453 = vst.msk [vmem:[%s302 + $0x38] sm:$0xf] %vm859, %v2431
      %2454 = vst.msk [vmem:[%s302 + $0x58] sm:$0xf] %vm859, %v2433
      %2455 = vst.msk [vmem:[%s302 + $0x78] sm:$0xf] %vm859, %v2435
      %2456 = vst.msk [vmem:[%s302 + $0x98] sm:$0xf] %vm859, %v2437
      %2457 = vst.msk [vmem:[%s302 + $0xb8] sm:$0xf] %vm859, %v2439
      %2458 = vst.msk [vmem:[%s302 + $0xd8] sm:$0xf] %vm859, %v2441
      %2459 = vst.msk [vmem:[%s302 + $0xf8] sm:$0xf] %vm859, %v2443
      %2460 = vrot.lane.b32.xlu0 %v588, 32
      %v2461 = vpop.permute.xlu0 %2460
      %2462 = vrot.lane.b32.xlu0 %v590, 32
      %v2463 = vpop.permute.xlu0 %2462
      %2464 = vrot.lane.b32.xlu0 %v592, 32
      %v2465 = vpop.permute.xlu0 %2464
      %2466 = vrot.lane.b32.xlu0 %v594, 32
      %v2467 = vpop.permute.xlu0 %2466
      %v2469 = vsel %vm603, %v2461, 0
      %v2472 = vsel %vm603, %v2463, 0
      %v2475 = vsel %vm603, %v2465, 0
      %v2478 = vsel %vm603, %v2467, 0
      %2480 = vmatprep.subr.bf16.mxu0 0
      %2481 = vmatpush1.bf16.msra.mxu0 0
      %2482 = vmatprep.subr.bf16.mxu0 0
      %2483 = vmatpush1.bf16.msra.mxu0 0
      %2484 = vmatprep.subr.bf16.mxu0 0
      %2485 = vmatpush1.bf16.msra.mxu0 0
      %2486 = vmatprep.subr.bf16.mxu0 0
      %2487 = vmatpush1.bf16.msra.mxu0 0
      %2488 = vmatprep.subr.bf16.mxu0 0
      %2489 = vmatpush1.bf16.msra.mxu0 0
      %2490 = vmatprep.subr.bf16.mxu0 0
      %2491 = vmatpush1.bf16.msra.mxu0 0
      %2492 = vmatprep.subr.bf16.mxu0 0
      %2493 = vmatpush1.bf16.msra.mxu0 0
      %2494 = vmatprep.subr.bf16.mxu0 0
      %2495 = vmatpush1.bf16.msra.mxu0 %v601
      %2496 = vmatprep.subr.bf16.mxu0 0
      %2497 = vmatpush2.bf16.msra.mxu0 0
      %2498 = vmatprep.subr.bf16.mxu0 0
      %2499 = vmatpush2.bf16.msra.mxu0 0
      %2500 = vmatprep.subr.bf16.mxu0 0
      %2501 = vmatpush2.bf16.msra.mxu0 0
      %2502 = vmatprep.subr.bf16.mxu0 0
      %2503 = vmatpush2.bf16.msra.mxu0 0
      %2504 = vmatprep.subr.bf16.mxu0 0
      %2505 = vmatpush2.bf16.msra.mxu0 0
      %2506 = vmatprep.subr.bf16.mxu0 0
      %2507 = vmatpush2.bf16.msra.mxu0 0
      %2508 = vmatprep.subr.bf16.mxu0 0
      %2509 = vmatpush2.bf16.msra.mxu0 0
      %2510 = vmatprep.subr.bf16.mxu0 0
      %2511 = vmatpush2.bf16.msra.mxu0 0
      %2512 = vmatprep.mubr.bf16.mxu0 0
      %2513 = vmatmul.mubr.bf16.gmra.mxu0 %v2469
      %v2514 = vpop.f32.mrf.mxu0
      %v2515 = vadd.f32 0.0, %v2514
      %v2516 = vpop.f32.mrf.mxu0
      %v2517 = vpop.f32.mrf.mxu0
      %v2518 = vadd.f32 0.0, %v2517
      %v2519 = vpop.f32.mrf.mxu0
      %2520 = vmatprep.mubr.bf16.mxu0 0
      %2521 = vmatmul.mubr.bf16.gmra.mxu0 %v2472
      %v2522 = vpop.f32.mrf.mxu0
      %v2523 = vadd.f32 0.0, %v2522
      %v2524 = vpop.f32.mrf.mxu0
      %v2525 = vpop.f32.mrf.mxu0
      %v2526 = vadd.f32 0.0, %v2525
      %v2527 = vpop.f32.mrf.mxu0
      %2528 = vmatprep.mubr.bf16.mxu0 0
      %2529 = vmatmul.mubr.bf16.gmra.mxu0 %v2475
      %v2530 = vpop.f32.mrf.mxu0
      %v2531 = vadd.f32 0.0, %v2530
      %v2532 = vpop.f32.mrf.mxu0
      %v2533 = vpop.f32.mrf.mxu0
      %v2534 = vadd.f32 0.0, %v2533
      %v2535 = vpop.f32.mrf.mxu0
      %2536 = vmatprep.mubr.bf16.mxu0 0
      %2537 = vmatmul.mubr.bf16.gmra.mxu0 %v2478
      %v2538 = vpop.f32.mrf.mxu0
      %v2539 = vadd.f32 0.0, %v2538
      %v2540 = vpop.f32.mrf.mxu0
      %v2541 = vpop.f32.mrf.mxu0
      %v2542 = vadd.f32 0.0, %v2541
      %v2543 = vpop.f32.mrf.mxu0
      %2544 = vdwg.mxu0
      %v2545 = vpack.c.bf16 %v2518, %v2515
      %v2546 = vpack.c.bf16 %v2526, %v2523
      %v2547 = vpack.c.bf16 %v2534, %v2531
      %v2548 = vpack.c.bf16 %v2542, %v2539
      %v2553 = vunpack.c.l.b16 %v2545
      %v2554 = vunpack.c.h.b16 %v2545
      %v2555 = vunpack.c.l.b16 %v2546
      %v2556 = vunpack.c.h.b16 %v2546
      %v2557 = vunpack.c.l.b16 %v2547
      %v2558 = vunpack.c.h.b16 %v2547
      %v2559 = vunpack.c.l.b16 %v2548
      %v2560 = vunpack.c.h.b16 %v2548
      %v2561 = vpack.c.b16 %v2553, %v2553
      %v2562 = vpack.c.b16 %v2554, %v2554
      %v2563 = vpack.c.b16 %v2555, %v2555
      %v2564 = vpack.c.b16 %v2556, %v2556
      %v2565 = vpack.c.b16 %v2557, %v2557
      %v2566 = vpack.c.b16 %v2558, %v2558
      %v2567 = vpack.c.b16 %v2559, %v2559
      %v2568 = vpack.c.b16 %v2560, %v2560
      %2577 = vst.msk [vmem:[%s302 + $0x1c] sm:$0xf] %vm713, %v2561
      %2578 = vst.msk [vmem:[%s302 + $0x3c] sm:$0xf] %vm713, %v2562
      %2579 = vst.msk [vmem:[%s302 + $0x5c] sm:$0xf] %vm713, %v2563
      %2580 = vst.msk [vmem:[%s302 + $0x7c] sm:$0xf] %vm713, %v2564
      %2581 = vst.msk [vmem:[%s302 + $0x9c] sm:$0xf] %vm713, %v2565
      %2582 = vst.msk [vmem:[%s302 + $0xbc] sm:$0xf] %vm713, %v2566
      %2583 = vst.msk [vmem:[%s302 + $0xdc] sm:$0xf] %vm713, %v2567
      %2584 = vst.msk [vmem:[%s302 + $0xfc] sm:$0xf] %vm713, %v2568
      %2585 = vrot.lane.b32.xlu0 %v588, 16
      %v2586 = vpop.permute.xlu0 %2585
      %2587 = vrot.lane.b32.xlu0 %v590, 16
      %v2588 = vpop.permute.xlu0 %2587
      %2589 = vrot.lane.b32.xlu0 %v592, 16
      %v2590 = vpop.permute.xlu0 %2589
      %2591 = vrot.lane.b32.xlu0 %v594, 16
      %v2592 = vpop.permute.xlu0 %2591
      %v2594 = vsel %vm603, %v2586, 0
      %v2597 = vsel %vm603, %v2588, 0
      %v2600 = vsel %vm603, %v2590, 0
      %v2603 = vsel %vm603, %v2592, 0
      %2605 = vmatprep.subr.bf16.mxu0 0
      %2606 = vmatpush1.bf16.msra.mxu0 0
      %2607 = vmatprep.subr.bf16.mxu0 0
      %2608 = vmatpush1.bf16.msra.mxu0 0
      %2609 = vmatprep.subr.bf16.mxu0 0
      %2610 = vmatpush1.bf16.msra.mxu0 0
      %2611 = vmatprep.subr.bf16.mxu0 0
      %2612 = vmatpush1.bf16.msra.mxu0 0
      %2613 = vmatprep.subr.bf16.mxu0 0
      %2614 = vmatpush1.bf16.msra.mxu0 0
      %2615 = vmatprep.subr.bf16.mxu0 0
      %2616 = vmatpush1.bf16.msra.mxu0 0
      %2617 = vmatprep.subr.bf16.mxu0 0
      %2618 = vmatpush1.bf16.msra.mxu0 0
      %2619 = vmatprep.subr.bf16.mxu0 0
      %2620 = vmatpush1.bf16.msra.mxu0 %v601
      %2621 = vmatprep.subr.bf16.mxu0 0
      %2622 = vmatpush2.bf16.msra.mxu0 0
      %2623 = vmatprep.subr.bf16.mxu0 0
      %2624 = vmatpush2.bf16.msra.mxu0 0
      %2625 = vmatprep.subr.bf16.mxu0 0
      %2626 = vmatpush2.bf16.msra.mxu0 0
      %2627 = vmatprep.subr.bf16.mxu0 0
      %2628 = vmatpush2.bf16.msra.mxu0 0
      %2629 = vmatprep.subr.bf16.mxu0 0
      %2630 = vmatpush2.bf16.msra.mxu0 0
      %2631 = vmatprep.subr.bf16.mxu0 0
      %2632 = vmatpush2.bf16.msra.mxu0 0
      %2633 = vmatprep.subr.bf16.mxu0 0
      %2634 = vmatpush2.bf16.msra.mxu0 0
      %2635 = vmatprep.subr.bf16.mxu0 0
      %2636 = vmatpush2.bf16.msra.mxu0 0
      %2637 = vmatprep.mubr.bf16.mxu0 0
      %2638 = vmatmul.mubr.bf16.gmra.mxu0 %v2594
      %v2639 = vpop.f32.mrf.mxu0
      %v2640 = vadd.f32 0.0, %v2639
      %v2641 = vpop.f32.mrf.mxu0
      %v2642 = vpop.f32.mrf.mxu0
      %v2643 = vadd.f32 0.0, %v2642
      %v2644 = vpop.f32.mrf.mxu0
      %2645 = vmatprep.mubr.bf16.mxu0 0
      %2646 = vmatmul.mubr.bf16.gmra.mxu0 %v2597
      %v2647 = vpop.f32.mrf.mxu0
      %v2648 = vadd.f32 0.0, %v2647
      %v2649 = vpop.f32.mrf.mxu0
      %v2650 = vpop.f32.mrf.mxu0
      %v2651 = vadd.f32 0.0, %v2650
      %v2652 = vpop.f32.mrf.mxu0
      %2653 = vmatprep.mubr.bf16.mxu0 0
      %2654 = vmatmul.mubr.bf16.gmra.mxu0 %v2600
      %v2655 = vpop.f32.mrf.mxu0
      %v2656 = vadd.f32 0.0, %v2655
      %v2657 = vpop.f32.mrf.mxu0
      %v2658 = vpop.f32.mrf.mxu0
      %v2659 = vadd.f32 0.0, %v2658
      %v2660 = vpop.f32.mrf.mxu0
      %2661 = vmatprep.mubr.bf16.mxu0 0
      %2662 = vmatmul.mubr.bf16.gmra.mxu0 %v2603
      %v2663 = vpop.f32.mrf.mxu0
      %v2664 = vadd.f32 0.0, %v2663
      %v2665 = vpop.f32.mrf.mxu0
      %v2666 = vpop.f32.mrf.mxu0
      %v2667 = vadd.f32 0.0, %v2666
      %v2668 = vpop.f32.mrf.mxu0
      %2669 = vdwg.mxu0
      %v2670 = vpack.c.bf16 %v2643, %v2640
      %v2671 = vpack.c.bf16 %v2651, %v2648
      %v2672 = vpack.c.bf16 %v2659, %v2656
      %v2673 = vpack.c.bf16 %v2667, %v2664
      %v2678 = vunpack.c.l.b16 %v2670
      %v2679 = vunpack.c.h.b16 %v2670
      %v2680 = vunpack.c.l.b16 %v2671
      %v2681 = vunpack.c.h.b16 %v2671
      %v2682 = vunpack.c.l.b16 %v2672
      %v2683 = vunpack.c.h.b16 %v2672
      %v2684 = vunpack.c.l.b16 %v2673
      %v2685 = vunpack.c.h.b16 %v2673
      %v2686 = vpack.c.b16 %v2678, %v2678
      %v2687 = vpack.c.b16 %v2679, %v2679
      %v2688 = vpack.c.b16 %v2680, %v2680
      %v2689 = vpack.c.b16 %v2681, %v2681
      %v2690 = vpack.c.b16 %v2682, %v2682
      %v2691 = vpack.c.b16 %v2683, %v2683
      %v2692 = vpack.c.b16 %v2684, %v2684
      %v2693 = vpack.c.b16 %v2685, %v2685
      %2694 = vrot.lane.b32.xlu0 %v2686, 64
      %v2695 = vpop.permute.xlu0 %2694
      %2696 = vrot.lane.b32.xlu0 %v2687, 64
      %v2697 = vpop.permute.xlu0 %2696
      %2698 = vrot.lane.b32.xlu0 %v2688, 64
      %v2699 = vpop.permute.xlu0 %2698
      %2700 = vrot.lane.b32.xlu0 %v2689, 64
      %v2701 = vpop.permute.xlu0 %2700
      %2702 = vrot.lane.b32.xlu0 %v2690, 64
      %v2703 = vpop.permute.xlu0 %2702
      %2704 = vrot.lane.b32.xlu0 %v2691, 64
      %v2705 = vpop.permute.xlu0 %2704
      %2706 = vrot.lane.b32.xlu0 %v2692, 64
      %v2707 = vpop.permute.xlu0 %2706
      %2708 = vrot.lane.b32.xlu0 %v2693, 64
      %v2709 = vpop.permute.xlu0 %2708
      %2718 = vst.msk [vmem:[%s302 + $0x1c] sm:$0xf] %vm859, %v2695
      %2719 = vst.msk [vmem:[%s302 + $0x3c] sm:$0xf] %vm859, %v2697
      %2720 = vst.msk [vmem:[%s302 + $0x5c] sm:$0xf] %vm859, %v2699
      %2721 = vst.msk [vmem:[%s302 + $0x7c] sm:$0xf] %vm859, %v2701
      %2722 = vst.msk [vmem:[%s302 + $0x9c] sm:$0xf] %vm859, %v2703
      %2723 = vst.msk [vmem:[%s302 + $0xbc] sm:$0xf] %vm859, %v2705
      %2724 = vst.msk [vmem:[%s302 + $0xdc] sm:$0xf] %vm859, %v2707
      %2725 = vst.msk [vmem:[%s302 + $0xfc] sm:$0xf] %vm859, %v2709
      %s2726 = smul.u32 8, %s21
      %p2727 = scmp.lt.s32.totalorder %s20, 1
      %s2728 = scalar_select %p2727, %s20, 1
      %p2729 = scmp.lt.s32.totalorder %s2726, 7
      %s2730 = scalar_select %p2729, %s2726, 7
      %s2731 = smul.addr %s2728, 64
      %s2732 = sadd.s32 %s2730, %s2731
      %s2733 = smul.addr %s2732, 4
      %s2734 = scalar_lea.vmem %s5, %s2733
      // Predicated region
      $region41: #{transition_block_forward.1} parent=39 // pred_check
        %p2735 = pneg %p170
      $region42: #{transition_block_forward.1} parent=39 // pred_check_branch
        %2737 = sbr.rel (%p2735) target = $region44
      $region43: #{transition_block_forward.1} parent=39 // pred_region
        %s2738 = smul.u32 8, %s21
      $region44: #{transition_block_forward.1} parent=39 // pred_fallthru
        _
    $region40: #{transition_block_forward.1} parent=5 // pred_fallthru
      _
    %p2739 = scmp.le.s32.totalorder 2, %s11
    // Predicated region
    $region45: #{transition_block_forward.1} parent=5 // pred_check
      %p2740 = pneg %p2739
    $region46: #{transition_block_forward.1} parent=5 // pred_check_branch
      %2742 = sbr.rel (%p2740) target = $region48
    $region47: #{transition_block_forward.1} parent=5 // pred_region
      %s2743 = ssub.s32 %s11, 2
      // Predicated region
      $region49: #{transition_block_forward.1} parent=47 // pred_check
        %p2744 = pneg %p176
      $region50: #{transition_block_forward.1} parent=47 // pred_check_branch
        %2746 = sbr.rel (%p2744) target = $region52
      $region51: #{transition_block_forward.1} parent=47 // pred_region
        %s2747 = smul.u32 8, %s23
        %p2748 = scmp.lt.s32.totalorder %s22, 1
        %s2749 = scalar_select %p2748, %s22, 1
        %p2750 = scmp.lt.s32.totalorder %s2747, 7
        %s2751 = scalar_select %p2750, %s2747, 7
        %s2752 = smul.addr %s2749, 64
        %s2753 = sadd.s32 %s2751, %s2752
        %s2754 = smul.addr %s2753, 4
        %s2755 = scalar_lea.vmem %s5, %s2754
      $region52: #{transition_block_forward.1} parent=47 // pred_fallthru
        _
    $region48: #{transition_block_forward.1} parent=5 // pred_fallthru
      _
  $region6: #{transition_block_forward.1} parent=0 // loop_footer
    %s15 = sadd.s32 1, %s11
  $region7: #{transition_block_forward.1} parent=0 // loop_footer_branch
    %10 = sbr.rel target = $region3
  $region8: #{transition_block_forward.1} parent=0 // loop_exit
    _

</llo_original>
